<compile_context>
chip_gen: v7x
topology: tpu7x:2x2x1
jax: 0.10.0
libtpu: 0.0.40
codegen_flags: <defaults>
</compile_context>

<pallas_src>
import functools

import jax
import jax.numpy as jnp
from jax.experimental import pallas as pl
from jax.experimental.pallas import tpu as pltpu

LANE = 128
SUBLANE = 8
_VMEM_LIMIT = 64 * 1024 * 1024


def _round_up(x, m):
    return ((x + m - 1) // m) * m


def _pad2(a, rows, cols):
    return jnp.pad(a, ((0, rows - a.shape[0]), (0, cols - a.shape[1])))


# ----------------------------------------------------------------------------
# Kernel 1: one GraphConv(aggr='add') layer + tanh.
#   h[i] = tanh( [ sum_k A[i,k] @ X[k]  ||  X[i] ] @ [W_rel ; W_root] + b )
# ----------------------------------------------------------------------------
def conv_tanh_kernel(a_ref, xk_ref, xi_ref, w_ref, b_ref, o_ref, acc_ref):
    k = pl.program_id(1)

    @pl.when(k == 0)
    def _():
        acc_ref[...] = jnp.zeros_like(acc_ref)

    # neighbor sum via dense adjacency tile matmul (bf16 in, f32 accumulate)
    acc_ref[...] += jnp.dot(a_ref[...], xk_ref[...],
                            preferred_element_type=jnp.float32)

    @pl.when(k == pl.num_programs(1) - 1)
    def _():
        # fuse the two GraphConv matmuls into a single MXU call
        fused = jnp.concatenate(
            [acc_ref[...].astype(xi_ref.dtype), xi_ref[...]], axis=-1)
        h = jnp.dot(fused, w_ref[...],
                    preferred_element_type=jnp.float32) + b_ref[...]
        o_ref[...] = jnp.tanh(h).astype(o_ref.dtype)


def _conv_layer(adj, h, w_stk, b, *, tile_m, tile_k):
    n_pad = adj.shape[0]
    c_pad = h.shape[1]
    h_dim = w_stk.shape[1]
    grid = (n_pad // tile_m, n_pad // tile_k)
    return pl.pallas_call(
        conv_tanh_kernel,
        out_shape=jax.ShapeDtypeStruct((n_pad, h_dim), jnp.bfloat16),
        grid_spec=pltpu.PrefetchScalarGridSpec(
            num_scalar_prefetch=0,
            grid=grid,
            in_specs=[
                pl.BlockSpec((tile_m, tile_k), lambda i, k: (i, k)),   # A tile
                pl.BlockSpec((tile_k, c_pad), lambda i, k: (k, 0)),    # X by k
                pl.BlockSpec((tile_m, c_pad), lambda i, k: (i, 0)),    # X by i
                pl.BlockSpec((2 * c_pad, h_dim), lambda i, k: (0, 0)),  # weights
                pl.BlockSpec((1, h_dim), lambda i, k: (0, 0)),          # bias
            ],
            out_specs=pl.BlockSpec((tile_m, h_dim), lambda i, k: (i, 0)),
            scratch_shapes=[pltpu.VMEM((tile_m, c_pad), jnp.float32)],
        ),
        compiler_params=pltpu.CompilerParams(
            dimension_semantics=("parallel", "arbitrary"),
            vmem_limit_bytes=_VMEM_LIMIT,
        ),
    )(adj, h, h, w_stk, b)


# ----------------------------------------------------------------------------
# Kernel 2: sigmoid(Linear(x)) followed by global_mean_pool, reduced over
# node-row tiles into a resident (G_pad, C_out_pad) accumulator.
# ----------------------------------------------------------------------------
def readout_pool_kernel(x_ref, w_ref, b_ref, p_ref, o_ref, acc_ref):
    i = pl.program_id(0)

    @pl.when(i == 0)
    def _():
        acc_ref[...] = jnp.zeros_like(acc_ref)

    y = jax.nn.sigmoid(
        jnp.dot(x_ref[...], w_ref[...], preferred_element_type=jnp.float32)
        + b_ref[...])
    acc_ref[...] += jnp.dot(p_ref[...], y, preferred_element_type=jnp.float32)

    @pl.when(i == pl.num_programs(0) - 1)
    def _():
        o_ref[...] = acc_ref[...]


def _readout_pool(h, w_ro, b_ro, pool, *, tile_m):
    n_pad, h_pad = h.shape
    g_pad = pool.shape[0]
    c_out_pad = w_ro.shape[1]
    grid = (n_pad // tile_m,)
    return pl.pallas_call(
        readout_pool_kernel,
        out_shape=jax.ShapeDtypeStruct((g_pad, c_out_pad), jnp.float32),
        grid_spec=pltpu.PrefetchScalarGridSpec(
            num_scalar_prefetch=0,
            grid=grid,
            in_specs=[
                pl.BlockSpec((tile_m, h_pad), lambda i: (i, 0)),
                pl.BlockSpec((h_pad, c_out_pad), lambda i: (0, 0)),
                pl.BlockSpec((1, c_out_pad), lambda i: (0, 0)),
                pl.BlockSpec((g_pad, tile_m), lambda i: (0, i)),
            ],
            out_specs=pl.BlockSpec((g_pad, c_out_pad), lambda i: (0, 0)),
            scratch_shapes=[pltpu.VMEM((g_pad, c_out_pad), jnp.float32)],
        ),
        compiler_params=pltpu.CompilerParams(
            dimension_semantics=("arbitrary",),
            vmem_limit_bytes=_VMEM_LIMIT,
        ),
    )(h, w_ro, b_ro, pool)


# ----------------------------------------------------------------------------
# Wrapper: padding / dense adjacency / pooling-matrix glue in plain JAX,
# then one pallas_call per conv layer plus one readout+pool call.
# ----------------------------------------------------------------------------
@functools.partial(jax.jit, static_argnames=("num_graphs",))
def net_forward(x, edge_index, batch, params, num_graphs):
    n, c_in = x.shape
    n_pad = _round_up(n, LANE)
    tile = 512 if n_pad % 512 == 0 else (256 if n_pad % 256 == 0 else 128)

    # dense adjacency: A[i, j] = #edges j -> i (small integer counts, exact bf16)
    src, dst = edge_index[0], edge_index[1]
    adj = jnp.zeros((n_pad, n_pad), jnp.float32).at[dst, src].add(1.0)
    adj = adj.astype(jnp.bfloat16)

    c_pad = _round_up(c_in, LANE)
    h = _pad2(x.astype(jnp.float32), n_pad, c_pad).astype(jnp.bfloat16)

    for (w_root, w_rel, b_rel) in params["convs"]:
        ci, hh = w_root.shape
        ci_pad = _round_up(ci, LANE)
        hh_pad = _round_up(hh, LANE)
        # stacked [W_rel ; W_root] along K -> one fused matmul in the kernel
        w_stk = jnp.concatenate(
            [_pad2(w_rel, ci_pad, hh_pad), _pad2(w_root, ci_pad, hh_pad)],
            axis=0).astype(jnp.bfloat16)
        b = _pad2(b_rel, 1, hh_pad)  # stays f32
        h = _conv_layer(adj, h, w_stk, b, tile_m=tile, tile_k=tile)

    # global_mean_pool as a normalized one-hot matrix P[g, i]
    g_pad = _round_up(num_graphs, SUBLANE)
    onehot = (batch[None, :] == jnp.arange(num_graphs)[:, None]).astype(jnp.float32)
    counts = jnp.maximum(onehot.sum(axis=1, keepdims=True), 1.0)
    pool = _pad2(onehot / counts, g_pad, n_pad)

    hh, c_out = params["w_ro"].shape
    hh_pad = _round_up(hh, LANE)
    c_out_pad = _round_up(c_out, LANE)
    w_ro = _pad2(params["w_ro"], hh_pad, c_out_pad).astype(jnp.bfloat16)
    b_ro = _pad2(params["b_ro"], 1, c_out_pad)

    out = _readout_pool(h, w_ro, b_ro, pool, tile_m=tile)
    return out[:num_graphs, :c_out]


# ----------------------------------------------------------------------------
# Pure-JAX f32 reference (correctness check only).
# ----------------------------------------------------------------------------
def net_forward_ref(x, edge_index, batch, params, num_graphs):
    n = x.shape[0]
    adj = jnp.zeros((n, n), jnp.float32).at[edge_index[1], edge_index[0]].add(1.0)
    h = x.astype(jnp.float32)
    for (w_root, w_rel, b_rel) in params["convs"]:
        agg = adj @ h
        h = jnp.tanh(agg @ w_rel + b_rel + h @ w_root)
    y = jax.nn.sigmoid(h @ params["w_ro"] + params["b_ro"])
    onehot = (batch[None, :] == jnp.arange(num_graphs)[:, None]).astype(jnp.float32)
    counts = jnp.maximum(onehot.sum(axis=1, keepdims=True), 1.0)
    return (onehot / counts) @ y


# ----------------------------------------------------------------------------
# Deterministic parameter init (shapes follow Net.__init__).
# ----------------------------------------------------------------------------
def init_params(key, in_channels, hidden_channels, out_channels, nc):
    convs = []
    c_in = in_channels
    for _ in range(nc):
        key, k1, k2, k3 = jax.random.split(key, 4)
        scale = 1.0 / jnp.sqrt(c_in)
        w_root = jax.random.uniform(k1, (c_in, hidden_channels), jnp.float32, -scale, scale)
        w_rel = jax.random.uniform(k2, (c_in, hidden_channels), jnp.float32, -scale, scale)
        b_rel = jax.random.uniform(k3, (1, hidden_channels), jnp.float32, -scale, scale)
        convs.append((w_root, w_rel, b_rel))
        c_in = hidden_channels
    key, k1, k2 = jax.random.split(key, 3)
    scale = 1.0 / jnp.sqrt(c_in)
    w_ro = jax.random.uniform(k1, (c_in, out_channels), jnp.float32, -scale, scale)
    b_ro = jax.random.uniform(k2, (1, out_channels), jnp.float32, -scale, scale)
    return {"convs": convs, "w_ro": w_ro, "b_ro": b_ro}


if __name__ == "__main__":
    in_channels, hidden_channels, out_channels, nc = 4, 32, 8, 2
    num_nodes, num_edges, num_graphs = 16, 40, 2

    key = jax.random.PRNGKey(0)
    key, kx, ke, kp = jax.random.split(key, 4)

    x = jax.random.normal(kx, (num_nodes, in_channels), jnp.float32)
    edge_index = jax.random.randint(ke, (2, num_edges), 0, num_nodes, dtype=jnp.int32)
    # contiguous batch assignment: first half -> graph 0, second half -> graph 1
    batch = jnp.concatenate(
        [jnp.zeros((num_nodes // 2,), jnp.int32),
         jnp.ones((num_nodes - num_nodes // 2,), jnp.int32)]
    )

    params = init_params(kp, in_channels, hidden_channels, out_channels, nc)

    out = net_forward(x, edge_index, batch, params, num_graphs)
    out = jax.block_until_ready(out)

    ref = net_forward_ref(x, edge_index, batch, params, num_graphs)
    assert out.shape == (num_graphs, out_channels)
    # bf16 inputs/weights with f32 accumulation -> compare at bf16-level tolerance
    assert jnp.allclose(out, ref, atol=2e-2, rtol=2e-2), "mismatch vs JAX reference"

    print("KERNEL_OK")
</pallas_src>

<mosaic_0001>
module attributes {stable_mosaic.version = 11 : i64} {
  func.func @conv_tanh_kernel(%arg0: i32, %arg1: i32, %arg2: memref<128x128xbf16, #tpu.memory_space<vmem>>, %arg3: memref<128x128xbf16, #tpu.memory_space<vmem>>, %arg4: memref<128x128xbf16, #tpu.memory_space<vmem>>, %arg5: memref<256x128xbf16, #tpu.memory_space<vmem>>, %arg6: memref<1x128xf32, #tpu.memory_space<vmem>>, %arg7: memref<128x128xbf16, #tpu.memory_space<vmem>>, %arg8: memref<128x128xf32, #tpu.memory_space<vmem>>) attributes {dimension_semantics = [#tpu.dimension_semantics<parallel>, #tpu.dimension_semantics<arbitrary>], iteration_bounds = array<i64: 1, 1>, scalar_prefetch = 0 : i64, scratch_operands = 1 : i64, tpu.core_type = #tpu.core_type<tc>, window_params = [{transform_indices = @transform_0, window_bounds = array<i64: 128, 128>}, {transform_indices = @transform_1, window_bounds = array<i64: 128, 128>}, {transform_indices = @transform_2, window_bounds = array<i64: 128, 128>}, {pipeline_mode = #tpu.pipeline_mode<synchronous>, transform_indices = @transform_3, window_bounds = array<i64: 256, 128>}, {pipeline_mode = #tpu.pipeline_mode<synchronous>, transform_indices = @transform_4, window_bounds = array<i64: 1, 128>}, {transform_indices = @transform_5, window_bounds = array<i64: 128, 128>}]} {
    %c0_i32 = arith.constant 0 : i32
    %0 = arith.cmpi eq, %arg1, %c0_i32 : i32
    %1 = arith.extui %0 : i1 to i32
    %c0_i32_0 = arith.constant 0 : i32
    %2 = arith.cmpi ne, %1, %c0_i32_0 : i32
    scf.if %2 {
      %cst_10 = arith.constant 0.000000e+00 : f32
      %12 = vector.broadcast %cst_10 : f32 to vector<128x128xf32>
      %c0_11 = arith.constant 0 : index
      %c0_12 = arith.constant 0 : index
      %13 = vector.load %arg8[%c0_11, %c0_12] : memref<128x128xf32, #tpu.memory_space<vmem>>, vector<128x128xf32>
      tpu.vector_store %arg8[%c0_11, %c0_12], %12 {strides = array<i32>} : memref<128x128xf32, #tpu.memory_space<vmem>>, vector<128x128xf32>,
    } else {
    }
    %c0 = arith.constant 0 : index
    %c0_1 = arith.constant 0 : index
    %3 = vector.load %arg8[%c0, %c0_1] : memref<128x128xf32, #tpu.memory_space<vmem>>, vector<128x128xf32>
    %c0_2 = arith.constant 0 : index
    %c0_3 = arith.constant 0 : index
    %4 = vector.load %arg2[%c0_2, %c0_3] : memref<128x128xbf16, #tpu.memory_space<vmem>>, vector<128x128xbf16>
    %c0_4 = arith.constant 0 : index
    %c0_5 = arith.constant 0 : index
    %5 = vector.load %arg3[%c0_4, %c0_5] : memref<128x128xbf16, #tpu.memory_space<vmem>>, vector<128x128xbf16>
    %cst = arith.constant dense<0.000000e+00> : vector<128x128xf32>
    %6 = tpu.matmul %4, %5, %cst {dimension_numbers = #tpu.dot_dimension_numbers<[1], [0], [0], [1], [0, 0, 1, 1], [], []>} : vector<128x128xbf16>, vector<128x128xbf16>, vector<128x128xf32> -> vector<128x128xf32>
    %7 = arith.addf %3, %6 : vector<128x128xf32>
    %c0_6 = arith.constant 0 : index
    %c0_7 = arith.constant 0 : index
    %8 = vector.load %arg8[%c0_6, %c0_7] : memref<128x128xf32, #tpu.memory_space<vmem>>, vector<128x128xf32>
    tpu.vector_store %arg8[%c0_6, %c0_7], %7 {strides = array<i32>} : memref<128x128xf32, #tpu.memory_space<vmem>>, vector<128x128xf32>,
    %c0_i32_8 = arith.constant 0 : i32
    %9 = arith.cmpi eq, %arg1, %c0_i32_8 : i32
    %10 = arith.extui %9 : i1 to i32
    %c0_i32_9 = arith.constant 0 : i32
    %11 = arith.cmpi ne, %10, %c0_i32_9 : i32
    scf.if %11 {
      %c0_10 = arith.constant 0 : index
      %c0_11 = arith.constant 0 : index
      %12 = vector.load %arg8[%c0_10, %c0_11] : memref<128x128xf32, #tpu.memory_space<vmem>>, vector<128x128xf32>
      %13 = arith.truncf %12 : vector<128x128xf32> to vector<128x128xbf16>
      %c0_12 = arith.constant 0 : index
      %c0_13 = arith.constant 0 : index
      %14 = vector.load %arg4[%c0_12, %c0_13] : memref<128x128xbf16, #tpu.memory_space<vmem>>, vector<128x128xbf16>
      %15 = tpu.concatenate %13, %14 in 1 : vector<128x128xbf16>, vector<128x128xbf16> -> vector<128x256xbf16>
      %c0_14 = arith.constant 0 : index
      %c0_15 = arith.constant 0 : index
      %16 = vector.load %arg5[%c0_14, %c0_15] : memref<256x128xbf16, #tpu.memory_space<vmem>>, vector<256x128xbf16>
      %cst_16 = arith.constant dense<0.000000e+00> : vector<128x128xf32>
      %17 = tpu.matmul %15, %16, %cst_16 {dimension_numbers = #tpu.dot_dimension_numbers<[1], [0], [0], [1], [0, 0, 1, 1], [], []>} : vector<128x256xbf16>, vector<256x128xbf16>, vector<128x128xf32> -> vector<128x128xf32>
      %c0_17 = arith.constant 0 : index
      %c0_18 = arith.constant 0 : index
      %18 = vector.load %arg6[%c0_17, %c0_18] : memref<1x128xf32, #tpu.memory_space<vmem>>, vector<1x128xf32>
      %19 = vector.broadcast %18 : vector<1x128xf32> to vector<128x128xf32>
      %20 = arith.addf %17, %19 : vector<128x128xf32>
      %21 = math.tanh %20 : vector<128x128xf32>
      %22 = arith.truncf %21 : vector<128x128xf32> to vector<128x128xbf16>
      %c0_19 = arith.constant 0 : index
      %c0_20 = arith.constant 0 : index
      %23 = vector.load %arg7[%c0_19, %c0_20] : memref<128x128xbf16, #tpu.memory_space<vmem>>, vector<128x128xbf16>
      tpu.vector_store %arg7[%c0_19, %c0_20], %22 {strides = array<i32>} : memref<128x128xbf16, #tpu.memory_space<vmem>>, vector<128x128xbf16>,
    } else {
    }
    return
  }
  func.func @transform_0(%arg0: i32, %arg1: i32) -> (i32, i32) {
    %c0_i32 = arith.constant 0 : i32
    return %arg0, %arg1 : i32, i32
  }
  func.func @transform_1(%arg0: i32, %arg1: i32) -> (i32, i32) {
    %c0_i32 = arith.constant 0 : i32
    %c0_i32_0 = arith.constant 0 : i32
    return %arg1, %c0_i32 : i32, i32
  }
  func.func @transform_2(%arg0: i32, %arg1: i32) -> (i32, i32) {
    %c0_i32 = arith.constant 0 : i32
    %c0_i32_0 = arith.constant 0 : i32
    return %arg0, %c0_i32 : i32, i32
  }
  func.func @transform_3(%arg0: i32, %arg1: i32) -> (i32, i32) {
    %c0_i32 = arith.constant 0 : i32
    %c0_i32_0 = arith.constant 0 : i32
    %c0_i32_1 = arith.constant 0 : i32
    return %c0_i32, %c0_i32_0 : i32, i32
  }
  func.func @transform_4(%arg0: i32, %arg1: i32) -> (i32, i32) {
    %c0_i32 = arith.constant 0 : i32
    %c0_i32_0 = arith.constant 0 : i32
    %c0_i32_1 = arith.constant 0 : i32
    return %c0_i32, %c0_i32_0 : i32, i32
  }
  func.func @transform_5(%arg0: i32, %arg1: i32) -> (i32, i32) {
    %c0_i32 = arith.constant 0 : i32
    %c0_i32_0 = arith.constant 0 : i32
    return %arg0, %c0_i32 : i32, i32
  }
}

module attributes {stable_mosaic.version = 11 : i64} {
  func.func @readout_pool_kernel(%arg0: i32, %arg1: memref<128x128xbf16, #tpu.memory_space<vmem>>, %arg2: memref<128x128xbf16, #tpu.memory_space<vmem>>, %arg3: memref<1x128xf32, #tpu.memory_space<vmem>>, %arg4: memref<8x128xf32, #tpu.memory_space<vmem>>, %arg5: memref<8x128xf32, #tpu.memory_space<vmem>>, %arg6: memref<8x128xf32, #tpu.memory_space<vmem>>) attributes {dimension_semantics = [#tpu.dimension_semantics<arbitrary>], iteration_bounds = array<i64: 1>, scalar_prefetch = 0 : i64, scratch_operands = 1 : i64, tpu.core_type = #tpu.core_type<tc>, window_params = [{transform_indices = @transform_0, window_bounds = array<i64: 128, 128>}, {pipeline_mode = #tpu.pipeline_mode<synchronous>, transform_indices = @transform_1, window_bounds = array<i64: 128, 128>}, {pipeline_mode = #tpu.pipeline_mode<synchronous>, transform_indices = @transform_2, window_bounds = array<i64: 1, 128>}, {transform_indices = @transform_3, window_bounds = array<i64: 8, 128>}, {pipeline_mode = #tpu.pipeline_mode<synchronous>, transform_indices = @transform_4, window_bounds = array<i64: 8, 128>}]} {
    %c0_i32 = arith.constant 0 : i32
    %0 = arith.cmpi eq, %arg0, %c0_i32 : i32
    %1 = arith.extui %0 : i1 to i32
    %c0_i32_0 = arith.constant 0 : i32
    %2 = arith.cmpi ne, %1, %c0_i32_0 : i32
    scf.if %2 {
      %cst_16 = arith.constant 0.000000e+00 : f32
      %22 = vector.broadcast %cst_16 : f32 to vector<8x128xf32>
      %c0_17 = arith.constant 0 : index
      %c0_18 = arith.constant 0 : index
      %23 = vector.load %arg6[%c0_17, %c0_18] : memref<8x128xf32, #tpu.memory_space<vmem>>, vector<8x128xf32>
      tpu.vector_store %arg6[%c0_17, %c0_18], %22 {strides = array<i32>} : memref<8x128xf32, #tpu.memory_space<vmem>>, vector<8x128xf32>,
    } else {
    }
    %c0 = arith.constant 0 : index
    %c0_1 = arith.constant 0 : index
    %3 = vector.load %arg1[%c0, %c0_1] : memref<128x128xbf16, #tpu.memory_space<vmem>>, vector<128x128xbf16>
    %c0_2 = arith.constant 0 : index
    %c0_3 = arith.constant 0 : index
    %4 = vector.load %arg2[%c0_2, %c0_3] : memref<128x128xbf16, #tpu.memory_space<vmem>>, vector<128x128xbf16>
    %cst = arith.constant dense<0.000000e+00> : vector<128x128xf32>
    %5 = tpu.matmul %3, %4, %cst {dimension_numbers = #tpu.dot_dimension_numbers<[1], [0], [0], [1], [0, 0, 1, 1], [], []>} : vector<128x128xbf16>, vector<128x128xbf16>, vector<128x128xf32> -> vector<128x128xf32>
    %c0_4 = arith.constant 0 : index
    %c0_5 = arith.constant 0 : index
    %6 = vector.load %arg3[%c0_4, %c0_5] : memref<1x128xf32, #tpu.memory_space<vmem>>, vector<1x128xf32>
    %7 = vector.broadcast %6 : vector<1x128xf32> to vector<128x128xf32>
    %8 = arith.addf %5, %7 : vector<128x128xf32>
    %9 = arith.negf %8 : vector<128x128xf32>
    %10 = math.exp %9 : vector<128x128xf32>
    %cst_6 = arith.constant 1.000000e+00 : f32
    %11 = vector.broadcast %cst_6 : f32 to vector<128x128xf32>
    %12 = arith.addf %11, %10 : vector<128x128xf32>
    %13 = arith.divf %11, %12 : vector<128x128xf32>
    %c0_7 = arith.constant 0 : index
    %c0_8 = arith.constant 0 : index
    %14 = vector.load %arg6[%c0_7, %c0_8] : memref<8x128xf32, #tpu.memory_space<vmem>>, vector<8x128xf32>
    %c0_9 = arith.constant 0 : index
    %c0_10 = arith.constant 0 : index
    %15 = vector.load %arg4[%c0_9, %c0_10] : memref<8x128xf32, #tpu.memory_space<vmem>>, vector<8x128xf32>
    %cst_11 = arith.constant dense<0.000000e+00> : vector<8x128xf32>
    %16 = tpu.matmul %15, %13, %cst_11 {dimension_numbers = #tpu.dot_dimension_numbers<[1], [0], [0], [1], [0, 0, 1, 1], [], []>} : vector<8x128xf32>, vector<128x128xf32>, vector<8x128xf32> -> vector<8x128xf32>
    %17 = arith.addf %14, %16 : vector<8x128xf32>
    %c0_12 = arith.constant 0 : index
    %c0_13 = arith.constant 0 : index
    %18 = vector.load %arg6[%c0_12, %c0_13] : memref<8x128xf32, #tpu.memory_space<vmem>>, vector<8x128xf32>
    tpu.vector_store %arg6[%c0_12, %c0_13], %17 {strides = array<i32>} : memref<8x128xf32, #tpu.memory_space<vmem>>, vector<8x128xf32>,
    %c0_i32_14 = arith.constant 0 : i32
    %19 = arith.cmpi eq, %arg0, %c0_i32_14 : i32
    %20 = arith.extui %19 : i1 to i32
    %c0_i32_15 = arith.constant 0 : i32
    %21 = arith.cmpi ne, %20, %c0_i32_15 : i32
    scf.if %21 {
      %c0_16 = arith.constant 0 : index
      %c0_17 = arith.constant 0 : index
      %22 = vector.load %arg6[%c0_16, %c0_17] : memref<8x128xf32, #tpu.memory_space<vmem>>, vector<8x128xf32>
      %c0_18 = arith.constant 0 : index
      %c0_19 = arith.constant 0 : index
      %23 = vector.load %arg5[%c0_18, %c0_19] : memref<8x128xf32, #tpu.memory_space<vmem>>, vector<8x128xf32>
      tpu.vector_store %arg5[%c0_18, %c0_19], %22 {strides = array<i32>} : memref<8x128xf32, #tpu.memory_space<vmem>>, vector<8x128xf32>,
    } else {
    }
    return
  }
  func.func @transform_0(%arg0: i32) -> (i32, i32) {
    %c0_i32 = arith.constant 0 : i32
    %c0_i32_0 = arith.constant 0 : i32
    return %arg0, %c0_i32 : i32, i32
  }
  func.func @transform_1(%arg0: i32) -> (i32, i32) {
    %c0_i32 = arith.constant 0 : i32
    %c0_i32_0 = arith.constant 0 : i32
    %c0_i32_1 = arith.constant 0 : i32
    return %c0_i32, %c0_i32_0 : i32, i32
  }
  func.func @transform_2(%arg0: i32) -> (i32, i32) {
    %c0_i32 = arith.constant 0 : i32
    %c0_i32_0 = arith.constant 0 : i32
    %c0_i32_1 = arith.constant 0 : i32
    return %c0_i32, %c0_i32_0 : i32, i32
  }
  func.func @transform_3(%arg0: i32) -> (i32, i32) {
    %c0_i32 = arith.constant 0 : i32
    %c0_i32_0 = arith.constant 0 : i32
    return %c0_i32, %arg0 : i32, i32
  }
  func.func @transform_4(%arg0: i32) -> (i32, i32) {
    %c0_i32 = arith.constant 0 : i32
    %c0_i32_0 = arith.constant 0 : i32
    %c0_i32_1 = arith.constant 0 : i32
    return %c0_i32, %c0_i32_0 : i32, i32
  }
}

</mosaic_0001>

<llo_original>
// kernel: net_forward.5
$region0: #{net_forward.5}
  #allocation0 [shape = 'u32[]', space=smem, size = 0x4, offset = 0x4, fixed_abs, tag = 'smem constant byte address 0x4 - core index']
  #allocation1 [shape = 'u32[144,128]{1,0:T(1,128)}', space=vmem, size = 0x12000, scoped, tag = 'internal scratch']
  #allocation2 [shape = 'f32[8,128]{1,0:T(8,128)}', space=vmem, size = 0x1000, scoped, tag = 'scratch operand']
  %s0 = inlined_call_operand.hbm [shape: bf16[128,128], index: 0, kind: input, shape index: {}]
  %s1 = inlined_call_operand.hbm [shape: bf16[128,128], index: 1, kind: input, shape index: {}]
  %s2 = inlined_call_operand.hbm [shape: f32[1,128], index: 2, kind: input, shape index: {}]
  %s3 = inlined_call_operand.hbm [shape: f32[8,128], index: 3, kind: input, shape index: {}]
  %s4 = inlined_call_operand.hbm [shape: f32[8,128], index: 4, kind: output, shape index: {}]
  %s5 = sld [smem:[#allocation0]]
  $region50: #{net_forward.5} parent=0
    _
  %s7 = ssub.s32 1, %s5
  %s8 = scalar_select 0, %s7, %s5
  $region1: #{net_forward.5} parent=0
    #allocation3 [shape = 'u8[32768]{0}', space=vmem, size = 0x8000, scoped, tag = 'input window, operand 0, single buffered']
    #allocation4 [shape = 's32[1]{0}', space=sflag, size = 0x4, scoped, tag = 'scoped memory for net_forward.5']
    #allocation5 [shape = 's32[1]{0}', space=sflag, size = 0x4, scoped, tag = 'scoped memory for net_forward.5']
    #allocation6 [shape = 'u8[32768]{0}', space=vmem, size = 0x8000, scoped, tag = 'input window, operand 1, single buffered']
    #allocation7 [shape = 's32[1]{0}', space=sflag, size = 0x4, scoped, tag = 'scoped memory for net_forward.5']
    #allocation8 [shape = 'u8[512]{0}', space=vmem, size = 0x400, scoped, tag = 'input window, operand 2, single buffered']
    #allocation9 [shape = 'u8[4096]{0}', space=vmem, size = 0x1000, scoped, tag = 'input window, operand 3, single buffered']
    #allocation10 [shape = 's32[1]{0}', space=sflag, size = 0x4, scoped, tag = 'scoped memory for net_forward.5']
    #allocation11 [shape = 'u8[4096]{0}', space=vmem, size = 0x1000, scoped, tag = 'output window, operand 0, single buffered']
    %9 = vsyncpa [#allocation4], 0
    %10 = vsyncpa [#allocation7], 0
    %11 = vsyncpa [#allocation10], 0
    %12 = vsyncpa [#allocation5], 0
    // Predicated region
    $region2: #{net_forward.5} parent=1 // pred_check
      _
    $region3: #{net_forward.5} parent=1 // pred_check_branch
      %14 = sbr.rel (0) target = $region5
    $region4: #{net_forward.5} parent=1 // pred_region
      %s16 = ssub.s32 1024, 1024
      %17 = vsyncadd [#allocation4], %s16
      %s18 = sshll.u32 [#allocation3], 4
      %s19 = int_to_ptr.vmem [resolvable:$true] %s18
      %24 = dma.hbm_to_vmem [thread:$0]  %s0, 1024, %s19, [#allocation4], 64, 64, 4
    $region5: #{net_forward.5} parent=1 // pred_fallthru
      _
    // Predicated region
    $region6: #{net_forward.5} parent=1 // pred_check
      _
    $region7: #{net_forward.5} parent=1 // pred_check_branch
      %26 = sbr.rel (0) target = $region9
    $region8: #{net_forward.5} parent=1 // pred_region
      %s28 = ssub.s32 1024, 1024
      %29 = vsyncadd [#allocation7], %s28
      %s30 = sshll.u32 [#allocation6], 4
      %s31 = int_to_ptr.vmem [resolvable:$true] %s30
      %36 = dma.hbm_to_vmem [thread:$0]  %s1, 1024, %s31, [#allocation7], 64, 64, 4
    $region9: #{net_forward.5} parent=1 // pred_fallthru
      _
    // Predicated region
    $region10: #{net_forward.5} parent=1 // pred_check
      _
    $region11: #{net_forward.5} parent=1 // pred_check_branch
      %38 = sbr.rel (0) target = $region13
    $region12: #{net_forward.5} parent=1 // pred_region
      %s40 = ssub.s32 16, 16
      %41 = vsyncadd [#allocation7], %s40
      %s43 = sshll.u32 [#allocation8], 4
      %s44 = int_to_ptr.vmem [resolvable:$true] %s43
      %46 = dma.hbm_to_vmem [thread:$0]  %s2, 16, %s44, [#allocation7]
    $region13: #{net_forward.5} parent=1 // pred_fallthru
      _
    // Predicated region
    $region14: #{net_forward.5} parent=1 // pred_check
      _
    $region15: #{net_forward.5} parent=1 // pred_check_branch
      %48 = sbr.rel (0) target = $region17
    $region16: #{net_forward.5} parent=1 // pred_region
      %s50 = ssub.s32 128, 128
      %51 = vsyncadd [#allocation10], %s50
      %s53 = sshll.u32 [#allocation9], 4
      %s54 = int_to_ptr.vmem [resolvable:$true] %s53
      %56 = dma.hbm_to_vmem [thread:$0]  %s3, 128, %s54, [#allocation10]
    $region17: #{net_forward.5} parent=1 // pred_fallthru
      _
    // Predicated region
    $region18: #{net_forward.5} parent=1 // pred_check
      _
    $region19: #{net_forward.5} parent=1 // pred_check_branch
      %58 = sbr.rel (0) target = $region21
    $region20: #{net_forward.5} parent=1 // pred_region
      %59 = dma.done [#allocation4], 1024
    $region21: #{net_forward.5} parent=1 // pred_fallthru
      _
    // Predicated region
    $region22: #{net_forward.5} parent=1 // pred_check
      _
    $region23: #{net_forward.5} parent=1 // pred_check_branch
      %61 = sbr.rel (0) target = $region25
    $region24: #{net_forward.5} parent=1 // pred_region
      %62 = dma.done [#allocation7], 1024
    $region25: #{net_forward.5} parent=1 // pred_fallthru
      _
    // Predicated region
    $region26: #{net_forward.5} parent=1 // pred_check
      _
    $region27: #{net_forward.5} parent=1 // pred_check_branch
      %64 = sbr.rel (0) target = $region29
    $region28: #{net_forward.5} parent=1 // pred_region
      %65 = dma.done [#allocation7], 16
    $region29: #{net_forward.5} parent=1 // pred_fallthru
      _
    // Predicated region
    $region30: #{net_forward.5} parent=1 // pred_check
      _
    $region31: #{net_forward.5} parent=1 // pred_check_branch
      %67 = sbr.rel (0) target = $region33
    $region32: #{net_forward.5} parent=1 // pred_region
      %68 = dma.done [#allocation10], 128
    $region33: #{net_forward.5} parent=1 // pred_fallthru
      _
    %p70 = scmp.eq.s32.totalorder 0, 0
    // Predicated region
    $region34: #{net_forward.5} parent=1 // pred_check
      %p71 = pneg %p70
    $region35: #{net_forward.5} parent=1 // pred_check_branch
      %73 = sbr.rel (%p71) target = $region37
    $region36: #{net_forward.5} parent=1 // pred_region
      %74 = vst [vmem:[#allocation2] sm:$0xff] 0.0
    $region37: #{net_forward.5} parent=1 // pred_fallthru
      _
    %v75 = vld [vmem:[#allocation3] sm:$0xf]
    %v76 = vld [vmem:[#allocation3 + $0x4] sm:$0xf]
    %v77 = vld [vmem:[#allocation3 + $0x8] sm:$0xf]
    %v78 = vld [vmem:[#allocation3 + $0xc] sm:$0xf]
    %v79 = vld [vmem:[#allocation3 + $0x10] sm:$0xf]
    %v80 = vld [vmem:[#allocation3 + $0x14] sm:$0xf]
    %v81 = vld [vmem:[#allocation3 + $0x18] sm:$0xf]
    %v82 = vld [vmem:[#allocation3 + $0x1c] sm:$0xf]
    %v83 = vld [vmem:[#allocation3 + $0x20] sm:$0xf]
    %v84 = vld [vmem:[#allocation3 + $0x24] sm:$0xf]
    %v85 = vld [vmem:[#allocation3 + $0x28] sm:$0xf]
    %v86 = vld [vmem:[#allocation3 + $0x2c] sm:$0xf]
    %v87 = vld [vmem:[#allocation3 + $0x30] sm:$0xf]
    %v88 = vld [vmem:[#allocation3 + $0x34] sm:$0xf]
    %v89 = vld [vmem:[#allocation3 + $0x38] sm:$0xf]
    %v90 = vld [vmem:[#allocation3 + $0x3c] sm:$0xf]
    %v91 = vld [vmem:[#allocation6] sm:$0xf]
    %v92 = vld [vmem:[#allocation6 + $0x4] sm:$0xf]
    %v93 = vld [vmem:[#allocation6 + $0x8] sm:$0xf]
    %v94 = vld [vmem:[#allocation6 + $0xc] sm:$0xf]
    %v95 = vld [vmem:[#allocation6 + $0x10] sm:$0xf]
    %v96 = vld [vmem:[#allocation6 + $0x14] sm:$0xf]
    %v97 = vld [vmem:[#allocation6 + $0x18] sm:$0xf]
    %v98 = vld [vmem:[#allocation6 + $0x1c] sm:$0xf]
    %v99 = vld [vmem:[#allocation6 + $0x20] sm:$0xf]
    %v100 = vld [vmem:[#allocation6 + $0x24] sm:$0xf]
    %v101 = vld [vmem:[#allocation6 + $0x28] sm:$0xf]
    %v102 = vld [vmem:[#allocation6 + $0x2c] sm:$0xf]
    %v103 = vld [vmem:[#allocation6 + $0x30] sm:$0xf]
    %v104 = vld [vmem:[#allocation6 + $0x34] sm:$0xf]
    %v105 = vld [vmem:[#allocation6 + $0x38] sm:$0xf]
    %v106 = vld [vmem:[#allocation6 + $0x3c] sm:$0xf]
    %v107 = vld [vmem:[#allocation8] sm:$0x1]
    %v109 = vlaneseq
    %v110 = vshrl.u32 %v109, 7
    %v111 = vsub.s32 0, %v110
    %v112 = vrot.slane %v107, %v111
    %v130 = vunpack.c.l.b16 %v75
    %v131 = vunpack.c.l.b16 %v76
    %v132 = vunpack.c.l.b16 %v77
    %v133 = vunpack.c.l.b16 %v78
    %v134 = vunpack.c.l.b16 %v79
    %v135 = vunpack.c.l.b16 %v80
    %v136 = vunpack.c.l.b16 %v81
    %v137 = vunpack.c.l.b16 %v82
    %v138 = vunpack.c.l.b16 %v83
    %v139 = vunpack.c.l.b16 %v84
    %v140 = vunpack.c.l.b16 %v85
    %v141 = vunpack.c.l.b16 %v86
    %v142 = vunpack.c.l.b16 %v87
    %v143 = vunpack.c.l.b16 %v88
    %v144 = vunpack.c.l.b16 %v89
    %v145 = vunpack.c.l.b16 %v90
    %v146 = vpack.c.b16 %v131, %v130
    %v147 = vpack.c.b16 %v133, %v132
    %v148 = vpack.c.b16 %v135, %v134
    %v149 = vpack.c.b16 %v137, %v136
    %v150 = vpack.c.b16 %v139, %v138
    %v151 = vpack.c.b16 %v141, %v140
    %v152 = vpack.c.b16 %v143, %v142
    %v153 = vpack.c.b16 %v145, %v144
    %v178 = vunpack.c.l.b16 %v91
    %v179 = vunpack.c.l.b16 %v92
    %v180 = vunpack.c.l.b16 %v93
    %v181 = vunpack.c.l.b16 %v94
    %v182 = vunpack.c.l.b16 %v95
    %v183 = vunpack.c.l.b16 %v96
    %v184 = vunpack.c.l.b16 %v97
    %v185 = vunpack.c.l.b16 %v98
    %v186 = vunpack.c.l.b16 %v99
    %v187 = vunpack.c.l.b16 %v100
    %v188 = vunpack.c.l.b16 %v101
    %v189 = vunpack.c.l.b16 %v102
    %v190 = vunpack.c.l.b16 %v103
    %v191 = vunpack.c.l.b16 %v104
    %v192 = vunpack.c.l.b16 %v105
    %v193 = vunpack.c.l.b16 %v106
    %v194 = vpack.c.b16 %v179, %v178
    %v195 = vpack.c.b16 %v181, %v180
    %v196 = vpack.c.b16 %v183, %v182
    %v197 = vpack.c.b16 %v185, %v184
    %v198 = vpack.c.b16 %v187, %v186
    %v199 = vpack.c.b16 %v189, %v188
    %v200 = vpack.c.b16 %v191, %v190
    %v201 = vpack.c.b16 %v193, %v192
    %210 = vmatprep.subr.bf16.mxu0 0
    %211 = vmatpush1.bf16.msra.mxu0 %v194
    %212 = vmatprep.subr.bf16.mxu0 0
    %213 = vmatpush1.bf16.msra.mxu0 %v195
    %214 = vmatprep.subr.bf16.mxu0 0
    %215 = vmatpush1.bf16.msra.mxu0 %v196
    %216 = vmatprep.subr.bf16.mxu0 0
    %217 = vmatpush1.bf16.msra.mxu0 %v197
    %218 = vmatprep.subr.bf16.mxu0 0
    %219 = vmatpush1.bf16.msra.mxu0 %v198
    %220 = vmatprep.subr.bf16.mxu0 0
    %221 = vmatpush1.bf16.msra.mxu0 %v199
    %222 = vmatprep.subr.bf16.mxu0 0
    %223 = vmatpush1.bf16.msra.mxu0 %v200
    %224 = vmatprep.subr.bf16.mxu0 0
    %225 = vmatpush1.bf16.msra.mxu0 %v201
    %226 = vmatprep.subr.bf16.mxu0 0
    %227 = vmatpush1.bf16.msra.mxu0 0
    %228 = vmatprep.subr.bf16.mxu0 0
    %229 = vmatpush1.bf16.msra.mxu0 0
    %230 = vmatprep.subr.bf16.mxu0 0
    %231 = vmatpush1.bf16.msra.mxu0 0
    %232 = vmatprep.subr.bf16.mxu0 0
    %233 = vmatpush1.bf16.msra.mxu0 0
    %234 = vmatprep.subr.bf16.mxu0 0
    %235 = vmatpush1.bf16.msra.mxu0 0
    %236 = vmatprep.subr.bf16.mxu0 0
    %237 = vmatpush1.bf16.msra.mxu0 0
    %238 = vmatprep.subr.bf16.mxu0 0
    %239 = vmatpush1.bf16.msra.mxu0 0
    %240 = vmatprep.subr.bf16.mxu0 0
    %241 = vmatpush1.bf16.msra.mxu0 0
    %242 = vmatprep.mubr.bf16.mxu0 0
    %243 = vmatmul.mubr.bf16.gmra.mrb[0].mxu0 %v146
    %v244 = vpop.f32.mrb[0].mxu0
    %v245 = vadd.f32 %v112, %v244
    %v246 = vpop.f32.mrb[0].mxu0
    %v247 = vpop.f32.mrb[0].mxu0
    %v248 = vadd.f32 %v112, %v247
    %v249 = vpop.f32.mrb[0].mxu0
    %250 = vmatprep.mubr.bf16.mxu0 0
    %251 = vmatmul.mubr.bf16.gmra.mrb[0].mxu0 %v147
    %v252 = vpop.f32.mrb[0].mxu0
    %v253 = vadd.f32 %v112, %v252
    %v254 = vpop.f32.mrb[0].mxu0
    %v255 = vpop.f32.mrb[0].mxu0
    %v256 = vadd.f32 %v112, %v255
    %v257 = vpop.f32.mrb[0].mxu0
    %258 = vmatprep.mubr.bf16.mxu0 0
    %259 = vmatmul.mubr.bf16.gmra.mrb[0].mxu0 %v148
    %v260 = vpop.f32.mrb[0].mxu0
    %v261 = vadd.f32 %v112, %v260
    %v262 = vpop.f32.mrb[0].mxu0
    %v263 = vpop.f32.mrb[0].mxu0
    %v264 = vadd.f32 %v112, %v263
    %v265 = vpop.f32.mrb[0].mxu0
    %266 = vmatprep.mubr.bf16.mxu0 0
    %267 = vmatmul.mubr.bf16.gmra.mrb[0].mxu0 %v149
    %v268 = vpop.f32.mrb[0].mxu0
    %v269 = vadd.f32 %v112, %v268
    %v270 = vpop.f32.mrb[0].mxu0
    %v271 = vpop.f32.mrb[0].mxu0
    %v272 = vadd.f32 %v112, %v271
    %v273 = vpop.f32.mrb[0].mxu0
    %274 = vmatprep.mubr.bf16.mxu0 0
    %275 = vmatmul.mubr.bf16.gmra.mrb[0].mxu0 %v150
    %v276 = vpop.f32.mrb[0].mxu0
    %v277 = vadd.f32 %v112, %v276
    %v278 = vpop.f32.mrb[0].mxu0
    %v279 = vpop.f32.mrb[0].mxu0
    %v280 = vadd.f32 %v112, %v279
    %v281 = vpop.f32.mrb[0].mxu0
    %282 = vmatprep.mubr.bf16.mxu0 0
    %283 = vmatmul.mubr.bf16.gmra.mrb[0].mxu0 %v151
    %v284 = vpop.f32.mrb[0].mxu0
    %v285 = vadd.f32 %v112, %v284
    %v286 = vpop.f32.mrb[0].mxu0
    %v287 = vpop.f32.mrb[0].mxu0
    %v288 = vadd.f32 %v112, %v287
    %v289 = vpop.f32.mrb[0].mxu0
    %290 = vmatprep.mubr.bf16.mxu0 0
    %291 = vmatmul.mubr.bf16.gmra.mrb[0].mxu0 %v152
    %v292 = vpop.f32.mrb[0].mxu0
    %v293 = vadd.f32 %v112, %v292
    %v294 = vpop.f32.mrb[0].mxu0
    %v295 = vpop.f32.mrb[0].mxu0
    %v296 = vadd.f32 %v112, %v295
    %v297 = vpop.f32.mrb[0].mxu0
    %298 = vmatprep.mubr.bf16.mxu0 0
    %299 = vmatmul.mubr.bf16.gmra.mrb[0].mxu0 %v153
    %v300 = vpop.f32.mrb[0].mxu0
    %v301 = vadd.f32 %v112, %v300
    %v302 = vpop.f32.mrb[0].mxu0
    %v303 = vpop.f32.mrb[0].mxu0
    %v304 = vadd.f32 %v112, %v303
    %v305 = vpop.f32.mrb[0].mxu0
    %306 = vdwg.mxu0
    %v307 = vxor.u32 %v245, 2147483648
    %v308 = vxor.u32 %v248, 2147483648
    %v309 = vxor.u32 %v253, 2147483648
    %v310 = vxor.u32 %v256, 2147483648
    %v311 = vxor.u32 %v261, 2147483648
    %v312 = vxor.u32 %v264, 2147483648
    %v313 = vxor.u32 %v269, 2147483648
    %v314 = vxor.u32 %v272, 2147483648
    %v315 = vxor.u32 %v277, 2147483648
    %v316 = vxor.u32 %v280, 2147483648
    %v317 = vxor.u32 %v285, 2147483648
    %v318 = vxor.u32 %v288, 2147483648
    %v319 = vxor.u32 %v293, 2147483648
    %v320 = vxor.u32 %v296, 2147483648
    %v321 = vxor.u32 %v301, 2147483648
    %v322 = vxor.u32 %v304, 2147483648
    %v323 = vmul.f32 %v307, 1.442695
    %v324 = vpow.pop %v323
    %v325 = vmul.f32 %v308, 1.442695
    %v326 = vpow.pop %v325
    %v327 = vmul.f32 %v309, 1.442695
    %v328 = vpow.pop %v327
    %v329 = vmul.f32 %v310, 1.442695
    %v330 = vpow.pop %v329
    %v331 = vmul.f32 %v311, 1.442695
    %v332 = vpow.pop %v331
    %v333 = vmul.f32 %v312, 1.442695
    %v334 = vpow.pop %v333
    %v335 = vmul.f32 %v313, 1.442695
    %v336 = vpow.pop %v335
    %v337 = vmul.f32 %v314, 1.442695
    %v338 = vpow.pop %v337
    %v339 = vmul.f32 %v315, 1.442695
    %v340 = vpow.pop %v339
    %v341 = vmul.f32 %v316, 1.442695
    %v342 = vpow.pop %v341
    %v343 = vmul.f32 %v317, 1.442695
    %v344 = vpow.pop %v343
    %v345 = vmul.f32 %v318, 1.442695
    %v346 = vpow.pop %v345
    %v347 = vmul.f32 %v319, 1.442695
    %v348 = vpow.pop %v347
    %v349 = vmul.f32 %v320, 1.442695
    %v350 = vpow.pop %v349
    %v351 = vmul.f32 %v321, 1.442695
    %v352 = vpow.pop %v351
    %v353 = vmul.f32 %v322, 1.442695
    %v354 = vpow.pop %v353
    %v355 = vadd.f32 %v324, 1.0
    %v356 = vadd.f32 %v326, 1.0
    %v357 = vadd.f32 %v328, 1.0
    %v358 = vadd.f32 %v330, 1.0
    %v359 = vadd.f32 %v332, 1.0
    %v360 = vadd.f32 %v334, 1.0
    %v361 = vadd.f32 %v336, 1.0
    %v362 = vadd.f32 %v338, 1.0
    %v363 = vadd.f32 %v340, 1.0
    %v364 = vadd.f32 %v342, 1.0
    %v365 = vadd.f32 %v344, 1.0
    %v366 = vadd.f32 %v346, 1.0
    %v367 = vadd.f32 %v348, 1.0
    %v368 = vadd.f32 %v350, 1.0
    %v369 = vadd.f32 %v352, 1.0
    %v370 = vadd.f32 %v354, 1.0
    %v371 = vrcp.pop %v355
    %v372 = vmul.f32 1.0, %v371
    %v373 = vrcp.pop %v356
    %v374 = vmul.f32 1.0, %v373
    %v375 = vrcp.pop %v357
    %v376 = vmul.f32 1.0, %v375
    %v377 = vrcp.pop %v358
    %v378 = vmul.f32 1.0, %v377
    %v379 = vrcp.pop %v359
    %v380 = vmul.f32 1.0, %v379
    %v381 = vrcp.pop %v360
    %v382 = vmul.f32 1.0, %v381
    %v383 = vrcp.pop %v361
    %v384 = vmul.f32 1.0, %v383
    %v385 = vrcp.pop %v362
    %v386 = vmul.f32 1.0, %v385
    %v387 = vrcp.pop %v363
    %v388 = vmul.f32 1.0, %v387
    %v389 = vrcp.pop %v364
    %v390 = vmul.f32 1.0, %v389
    %v391 = vrcp.pop %v365
    %v392 = vmul.f32 1.0, %v391
    %v393 = vrcp.pop %v366
    %v394 = vmul.f32 1.0, %v393
    %v395 = vrcp.pop %v367
    %v396 = vmul.f32 1.0, %v395
    %v397 = vrcp.pop %v368
    %v398 = vmul.f32 1.0, %v397
    %v399 = vrcp.pop %v369
    %v400 = vmul.f32 1.0, %v399
    %v401 = vrcp.pop %v370
    %v402 = vmul.f32 1.0, %v401
    %v403 = vld [vmem:[#allocation2] sm:$0xff]
    %v404 = vld [vmem:[#allocation9] sm:$0xff]
    %405 = vmatprep.subr.mxu0 0.0
    %406 = vmatpush1.msra.mxu0 %v372
    %407 = vmatprep.subr.mxu0 0.0
    %408 = vmatpush1.msra.mxu0 %v374
    %409 = vmatprep.subr.mxu0 0.0
    %410 = vmatpush1.msra.mxu0 %v376
    %411 = vmatprep.subr.mxu0 0.0
    %412 = vmatpush1.msra.mxu0 %v378
    %413 = vmatprep.subr.mxu0 0.0
    %414 = vmatpush1.msra.mxu0 %v380
    %415 = vmatprep.subr.mxu0 0.0
    %416 = vmatpush1.msra.mxu0 %v382
    %417 = vmatprep.subr.mxu0 0.0
    %418 = vmatpush1.msra.mxu0 %v384
    %419 = vmatprep.subr.mxu0 0.0
    %420 = vmatpush1.msra.mxu0 %v386
    %421 = vmatprep.subr.mxu0 0.0
    %422 = vmatpush1.msra.mxu0 %v388
    %423 = vmatprep.subr.mxu0 0.0
    %424 = vmatpush1.msra.mxu0 %v390
    %425 = vmatprep.subr.mxu0 0.0
    %426 = vmatpush1.msra.mxu0 %v392
    %427 = vmatprep.subr.mxu0 0.0
    %428 = vmatpush1.msra.mxu0 %v394
    %429 = vmatprep.subr.mxu0 0.0
    %430 = vmatpush1.msra.mxu0 %v396
    %431 = vmatprep.subr.mxu0 0.0
    %432 = vmatpush1.msra.mxu0 %v398
    %433 = vmatprep.subr.mxu0 0.0
    %434 = vmatpush1.msra.mxu0 %v400
    %435 = vmatprep.subr.mxu0 0.0
    %436 = vmatpush1.msra.mxu0 %v402
    %437 = vmatprep.subr.mxu0 0.0
    %438 = vmatpush1.msra.mxu0 0.0
    %439 = vmatprep.subr.mxu0 0.0
    %440 = vmatpush1.msra.mxu0 0.0
    %441 = vmatprep.subr.mxu0 0.0
    %442 = vmatpush1.msra.mxu0 0.0
    %443 = vmatprep.subr.mxu0 0.0
    %444 = vmatpush1.msra.mxu0 0.0
    %445 = vmatprep.subr.mxu0 0.0
    %446 = vmatpush1.msra.mxu0 0.0
    %447 = vmatprep.subr.mxu0 0.0
    %448 = vmatpush1.msra.mxu0 0.0
    %449 = vmatprep.subr.mxu0 0.0
    %450 = vmatpush1.msra.mxu0 0.0
    %451 = vmatprep.subr.mxu0 0.0
    %452 = vmatpush1.msra.mxu0 0.0
    %453 = vmatprep.subr.mxu0 0.0
    %454 = vmatpush1.msra.mxu0 0.0
    %455 = vmatprep.subr.mxu0 0.0
    %456 = vmatpush1.msra.mxu0 0.0
    %457 = vmatprep.subr.mxu0 0.0
    %458 = vmatpush1.msra.mxu0 0.0
    %459 = vmatprep.subr.mxu0 0.0
    %460 = vmatpush1.msra.mxu0 0.0
    %461 = vmatprep.subr.mxu0 0.0
    %462 = vmatpush1.msra.mxu0 0.0
    %463 = vmatprep.subr.mxu0 0.0
    %464 = vmatpush1.msra.mxu0 0.0
    %465 = vmatprep.subr.mxu0 0.0
    %466 = vmatpush1.msra.mxu0 0.0
    %467 = vmatprep.subr.mxu0 0.0
    %468 = vmatpush1.msra.mxu0 0.0
    %469 = vmatprep.mubr.f32.mxu0 0.0
    %470 = vmatmul.mubr.f32.gmra.mrb[0].mxu0 %v404
    %v471 = vpop.f32.mrb[0].mxu0
    %v472 = vadd.f32 0.0, %v471
    %v473 = vpop.f32.mrb[0].mxu0
    %474 = vdwg.mxu0
    %v475 = vadd.f32 %v403, %v472
    %476 = vst [vmem:[#allocation2] sm:$0xff] %v475
    // Predicated region
    $region38: #{net_forward.5} parent=1 // pred_check
      %p477 = pneg %p70
    $region39: #{net_forward.5} parent=1 // pred_check_branch
      %479 = sbr.rel (%p477) target = $region41
    $region40: #{net_forward.5} parent=1 // pred_region
      %v480 = vld [vmem:[#allocation2] sm:$0xff]
      %481 = vst [vmem:[#allocation11] sm:$0xff] %v480
    $region41: #{net_forward.5} parent=1 // pred_fallthru
      _
    // Predicated region
    $region42: #{net_forward.5} parent=1 // pred_check
      _
    $region43: #{net_forward.5} parent=1 // pred_check_branch
      %483 = sbr.rel (0) target = $region45
    $region44: #{net_forward.5} parent=1 // pred_region
      %s485 = ssub.s32 128, 128
      %486 = vsyncadd [#allocation5], %s485
      %s488 = sshll.u32 [#allocation11], 4
      %s489 = int_to_ptr.vmem [resolvable:$true] %s488
      %491 = dma.vmem_to_hbm [thread:$0]  %s489, 128, %s4, [#allocation5]
    $region45: #{net_forward.5} parent=1 // pred_fallthru
      _
    // Predicated region
    $region46: #{net_forward.5} parent=1 // pred_check
      _
    $region47: #{net_forward.5} parent=1 // pred_check_branch
      %493 = sbr.rel (0) target = $region49
    $region48: #{net_forward.5} parent=1 // pred_region
      %494 = dma.done [#allocation5], 128
    $region49: #{net_forward.5} parent=1 // pred_fallthru
      _
    %495 = vsyncpa [#allocation4], 1
    %496 = vsyncpa [#allocation7], 1
    %497 = vsyncpa [#allocation10], 1
    %498 = vsyncpa [#allocation5], 1

// kernel: net_forward.3
$region0: #{net_forward.3}
  #allocation0 [shape = 'u32[]', space=smem, size = 0x4, offset = 0x4, fixed_abs, tag = 'smem constant byte address 0x4 - core index']
  #allocation1 [shape = 'u32[144,128]{1,0:T(1,128)}', space=vmem, size = 0x12000, scoped, tag = 'internal scratch']
  #allocation2 [shape = 'f32[128,128]{1,0:T(8,128)}', space=vmem, size = 0x10000, scoped, tag = 'scratch operand']
  %s0 = inlined_call_operand.hbm [shape: bf16[128,128], index: 0, kind: input, shape index: {}]
  %s1 = inlined_call_operand.hbm [shape: bf16[128,128], index: 1, kind: input, shape index: {}, may-alias: {1,2}]
  %s2 = inlined_call_operand.hbm [shape: bf16[128,128], index: 2, kind: input, shape index: {}, may-alias: {1,2}]
  %s3 = inlined_call_operand.hbm [shape: bf16[256,128], index: 3, kind: input, shape index: {}]
  %s4 = inlined_call_operand.hbm [shape: f32[1,128], index: 4, kind: input, shape index: {}]
  %s5 = inlined_call_operand.hbm [shape: bf16[128,128], index: 5, kind: output, shape index: {}]
  %s6 = sld [smem:[#allocation0]]
  $region58: #{net_forward.3} parent=0
    _
  %s8 = ssub.s32 1, %s6
  %s9 = scalar_select 0, %s8, %s6
  $region1: #{net_forward.3} parent=0
    #allocation3 [shape = 'u8[32768]{0}', space=vmem, size = 0x8000, scoped, tag = 'input window, operand 0, single buffered']
    #allocation4 [shape = 's32[1]{0}', space=sflag, size = 0x4, scoped, tag = 'scoped memory for net_forward.3']
    #allocation5 [shape = 's32[1]{0}', space=sflag, size = 0x4, scoped, tag = 'scoped memory for net_forward.3']
    #allocation6 [shape = 'u8[32768]{0}', space=vmem, size = 0x8000, scoped, tag = 'input window, operand 1, single buffered']
    #allocation7 [shape = 's32[1]{0}', space=sflag, size = 0x4, scoped, tag = 'scoped memory for net_forward.3']
    #allocation8 [shape = 'u8[32768]{0}', space=vmem, size = 0x8000, scoped, tag = 'input window, operand 2, single buffered']
    #allocation9 [shape = 'u8[65536]{0}', space=vmem, size = 0x10000, scoped, tag = 'input window, operand 3, single buffered']
    #allocation10 [shape = 's32[1]{0}', space=sflag, size = 0x4, scoped, tag = 'scoped memory for net_forward.3']
    #allocation11 [shape = 'u8[512]{0}', space=vmem, size = 0x400, scoped, tag = 'input window, operand 4, single buffered']
    #allocation12 [shape = 'u8[32768]{0}', space=vmem, size = 0x8000, scoped, tag = 'output window, operand 0, single buffered']
    %10 = vsyncpa [#allocation4], 0
    %11 = vsyncpa [#allocation7], 0
    %12 = vsyncpa [#allocation10], 0
    %13 = vsyncpa [#allocation5], 0
    // Predicated region
    $region2: #{net_forward.3} parent=1 // pred_check
      _
    $region3: #{net_forward.3} parent=1 // pred_check_branch
      %15 = sbr.rel (0) target = $region5
    $region4: #{net_forward.3} parent=1 // pred_region
      %s17 = ssub.s32 1024, 1024
      %18 = vsyncadd [#allocation4], %s17
      %s19 = sshll.u32 [#allocation3], 4
      %s20 = int_to_ptr.vmem [resolvable:$true] %s19
      %25 = dma.hbm_to_vmem [thread:$0]  %s0, 1024, %s20, [#allocation4], 64, 64, 4
    $region5: #{net_forward.3} parent=1 // pred_fallthru
      _
    // Predicated region
    $region6: #{net_forward.3} parent=1 // pred_check
      _
    $region7: #{net_forward.3} parent=1 // pred_check_branch
      %27 = sbr.rel (0) target = $region9
    $region8: #{net_forward.3} parent=1 // pred_region
      %s29 = ssub.s32 1024, 1024
      %30 = vsyncadd [#allocation7], %s29
      %s31 = sshll.u32 [#allocation6], 4
      %s32 = int_to_ptr.vmem [resolvable:$true] %s31
      %37 = dma.hbm_to_vmem [thread:$0]  %s1, 1024, %s32, [#allocation7], 64, 64, 4
    $region9: #{net_forward.3} parent=1 // pred_fallthru
      _
    // Predicated region
    $region10: #{net_forward.3} parent=1 // pred_check
      _
    $region11: #{net_forward.3} parent=1 // pred_check_branch
      %39 = sbr.rel (0) target = $region13
    $region12: #{net_forward.3} parent=1 // pred_region
      %s41 = ssub.s32 1024, 1024
      %42 = vsyncadd [#allocation7], %s41
      %s43 = sshll.u32 [#allocation8], 4
      %s44 = int_to_ptr.vmem [resolvable:$true] %s43
      %49 = dma.hbm_to_vmem [thread:$0]  %s2, 1024, %s44, [#allocation7], 64, 64, 4
    $region13: #{net_forward.3} parent=1 // pred_fallthru
      _
    // Predicated region
    $region14: #{net_forward.3} parent=1 // pred_check
      _
    $region15: #{net_forward.3} parent=1 // pred_check_branch
      %51 = sbr.rel (0) target = $region17
    $region16: #{net_forward.3} parent=1 // pred_region
      %s53 = ssub.s32 2048, 2048
      %54 = vsyncadd [#allocation10], %s53
      %s55 = sshll.u32 [#allocation9], 4
      %s56 = int_to_ptr.vmem [resolvable:$true] %s55
      %61 = dma.hbm_to_vmem [thread:$0]  %s3, 2048, %s56, [#allocation10], 64, 64, 4
    $region17: #{net_forward.3} parent=1 // pred_fallthru
      _
    // Predicated region
    $region18: #{net_forward.3} parent=1 // pred_check
      _
    $region19: #{net_forward.3} parent=1 // pred_check_branch
      %63 = sbr.rel (0) target = $region21
    $region20: #{net_forward.3} parent=1 // pred_region
      %s65 = ssub.s32 16, 16
      %66 = vsyncadd [#allocation10], %s65
      %s68 = sshll.u32 [#allocation11], 4
      %s69 = int_to_ptr.vmem [resolvable:$true] %s68
      %71 = dma.hbm_to_vmem [thread:$0]  %s4, 16, %s69, [#allocation10]
    $region21: #{net_forward.3} parent=1 // pred_fallthru
      _
    // Predicated region
    $region22: #{net_forward.3} parent=1 // pred_check
      _
    $region23: #{net_forward.3} parent=1 // pred_check_branch
      %73 = sbr.rel (0) target = $region25
    $region24: #{net_forward.3} parent=1 // pred_region
      %74 = dma.done [#allocation4], 1024
    $region25: #{net_forward.3} parent=1 // pred_fallthru
      _
    // Predicated region
    $region26: #{net_forward.3} parent=1 // pred_check
      _
    $region27: #{net_forward.3} parent=1 // pred_check_branch
      %76 = sbr.rel (0) target = $region29
    $region28: #{net_forward.3} parent=1 // pred_region
      %77 = dma.done [#allocation7], 1024
    $region29: #{net_forward.3} parent=1 // pred_fallthru
      _
    // Predicated region
    $region30: #{net_forward.3} parent=1 // pred_check
      _
    $region31: #{net_forward.3} parent=1 // pred_check_branch
      %79 = sbr.rel (0) target = $region33
    $region32: #{net_forward.3} parent=1 // pred_region
      %80 = dma.done [#allocation7], 1024
    $region33: #{net_forward.3} parent=1 // pred_fallthru
      _
    // Predicated region
    $region34: #{net_forward.3} parent=1 // pred_check
      _
    $region35: #{net_forward.3} parent=1 // pred_check_branch
      %82 = sbr.rel (0) target = $region37
    $region36: #{net_forward.3} parent=1 // pred_region
      %83 = dma.done [#allocation10], 2048
    $region37: #{net_forward.3} parent=1 // pred_fallthru
      _
    // Predicated region
    $region38: #{net_forward.3} parent=1 // pred_check
      _
    $region39: #{net_forward.3} parent=1 // pred_check_branch
      %85 = sbr.rel (0) target = $region41
    $region40: #{net_forward.3} parent=1 // pred_region
      %86 = dma.done [#allocation10], 16
    $region41: #{net_forward.3} parent=1 // pred_fallthru
      _
    %p88 = scmp.eq.s32.totalorder 0, 0
    // Predicated region
    $region42: #{net_forward.3} parent=1 // pred_check
      %p89 = pneg %p88
    $region43: #{net_forward.3} parent=1 // pred_check_branch
      %91 = sbr.rel (%p89) target = $region45
    $region44: #{net_forward.3} parent=1 // pred_region
      %92 = vst [vmem:[#allocation2] sm:$0xff] 0.0
      %93 = vst [vmem:[#allocation2 + $0x8] sm:$0xff] 0.0
      %94 = vst [vmem:[#allocation2 + $0x10] sm:$0xff] 0.0
      %95 = vst [vmem:[#allocation2 + $0x18] sm:$0xff] 0.0
      %96 = vst [vmem:[#allocation2 + $0x20] sm:$0xff] 0.0
      %97 = vst [vmem:[#allocation2 + $0x28] sm:$0xff] 0.0
      %98 = vst [vmem:[#allocation2 + $0x30] sm:$0xff] 0.0
      %99 = vst [vmem:[#allocation2 + $0x38] sm:$0xff] 0.0
      %100 = vst [vmem:[#allocation2 + $0x40] sm:$0xff] 0.0
      %101 = vst [vmem:[#allocation2 + $0x48] sm:$0xff] 0.0
      %102 = vst [vmem:[#allocation2 + $0x50] sm:$0xff] 0.0
      %103 = vst [vmem:[#allocation2 + $0x58] sm:$0xff] 0.0
      %104 = vst [vmem:[#allocation2 + $0x60] sm:$0xff] 0.0
      %105 = vst [vmem:[#allocation2 + $0x68] sm:$0xff] 0.0
      %106 = vst [vmem:[#allocation2 + $0x70] sm:$0xff] 0.0
      %107 = vst [vmem:[#allocation2 + $0x78] sm:$0xff] 0.0
    $region45: #{net_forward.3} parent=1 // pred_fallthru
      _
    %v108 = vld [vmem:[#allocation2] sm:$0xff]
    %v109 = vld [vmem:[#allocation2 + $0x8] sm:$0xff]
    %v110 = vld [vmem:[#allocation2 + $0x10] sm:$0xff]
    %v111 = vld [vmem:[#allocation2 + $0x18] sm:$0xff]
    %v112 = vld [vmem:[#allocation2 + $0x20] sm:$0xff]
    %v113 = vld [vmem:[#allocation2 + $0x28] sm:$0xff]
    %v114 = vld [vmem:[#allocation2 + $0x30] sm:$0xff]
    %v115 = vld [vmem:[#allocation2 + $0x38] sm:$0xff]
    %v116 = vld [vmem:[#allocation2 + $0x40] sm:$0xff]
    %v117 = vld [vmem:[#allocation2 + $0x48] sm:$0xff]
    %v118 = vld [vmem:[#allocation2 + $0x50] sm:$0xff]
    %v119 = vld [vmem:[#allocation2 + $0x58] sm:$0xff]
    %v120 = vld [vmem:[#allocation2 + $0x60] sm:$0xff]
    %v121 = vld [vmem:[#allocation2 + $0x68] sm:$0xff]
    %v122 = vld [vmem:[#allocation2 + $0x70] sm:$0xff]
    %v123 = vld [vmem:[#allocation2 + $0x78] sm:$0xff]
    %v124 = vld [vmem:[#allocation3] sm:$0xf]
    %v125 = vld [vmem:[#allocation3 + $0x4] sm:$0xf]
    %v126 = vld [vmem:[#allocation3 + $0x8] sm:$0xf]
    %v127 = vld [vmem:[#allocation3 + $0xc] sm:$0xf]
    %v128 = vld [vmem:[#allocation3 + $0x10] sm:$0xf]
    %v129 = vld [vmem:[#allocation3 + $0x14] sm:$0xf]
    %v130 = vld [vmem:[#allocation3 + $0x18] sm:$0xf]
    %v131 = vld [vmem:[#allocation3 + $0x1c] sm:$0xf]
    %v132 = vld [vmem:[#allocation3 + $0x20] sm:$0xf]
    %v133 = vld [vmem:[#allocation3 + $0x24] sm:$0xf]
    %v134 = vld [vmem:[#allocation3 + $0x28] sm:$0xf]
    %v135 = vld [vmem:[#allocation3 + $0x2c] sm:$0xf]
    %v136 = vld [vmem:[#allocation3 + $0x30] sm:$0xf]
    %v137 = vld [vmem:[#allocation3 + $0x34] sm:$0xf]
    %v138 = vld [vmem:[#allocation3 + $0x38] sm:$0xf]
    %v139 = vld [vmem:[#allocation3 + $0x3c] sm:$0xf]
    %v140 = vld [vmem:[#allocation6] sm:$0xf]
    %v141 = vld [vmem:[#allocation6 + $0x4] sm:$0xf]
    %v142 = vld [vmem:[#allocation6 + $0x8] sm:$0xf]
    %v143 = vld [vmem:[#allocation6 + $0xc] sm:$0xf]
    %v144 = vld [vmem:[#allocation6 + $0x10] sm:$0xf]
    %v145 = vld [vmem:[#allocation6 + $0x14] sm:$0xf]
    %v146 = vld [vmem:[#allocation6 + $0x18] sm:$0xf]
    %v147 = vld [vmem:[#allocation6 + $0x1c] sm:$0xf]
    %v148 = vld [vmem:[#allocation6 + $0x20] sm:$0xf]
    %v149 = vld [vmem:[#allocation6 + $0x24] sm:$0xf]
    %v150 = vld [vmem:[#allocation6 + $0x28] sm:$0xf]
    %v151 = vld [vmem:[#allocation6 + $0x2c] sm:$0xf]
    %v152 = vld [vmem:[#allocation6 + $0x30] sm:$0xf]
    %v153 = vld [vmem:[#allocation6 + $0x34] sm:$0xf]
    %v154 = vld [vmem:[#allocation6 + $0x38] sm:$0xf]
    %v155 = vld [vmem:[#allocation6 + $0x3c] sm:$0xf]
    %v172 = vunpack.c.l.b16 %v124
    %v173 = vunpack.c.l.b16 %v125
    %v174 = vunpack.c.l.b16 %v126
    %v175 = vunpack.c.l.b16 %v127
    %v176 = vunpack.c.l.b16 %v128
    %v177 = vunpack.c.l.b16 %v129
    %v178 = vunpack.c.l.b16 %v130
    %v179 = vunpack.c.l.b16 %v131
    %v180 = vunpack.c.l.b16 %v132
    %v181 = vunpack.c.l.b16 %v133
    %v182 = vunpack.c.l.b16 %v134
    %v183 = vunpack.c.l.b16 %v135
    %v184 = vunpack.c.l.b16 %v136
    %v185 = vunpack.c.l.b16 %v137
    %v186 = vunpack.c.l.b16 %v138
    %v187 = vunpack.c.l.b16 %v139
    %v188 = vpack.c.b16 %v173, %v172
    %v189 = vpack.c.b16 %v175, %v174
    %v190 = vpack.c.b16 %v177, %v176
    %v191 = vpack.c.b16 %v179, %v178
    %v192 = vpack.c.b16 %v181, %v180
    %v193 = vpack.c.b16 %v183, %v182
    %v194 = vpack.c.b16 %v185, %v184
    %v195 = vpack.c.b16 %v187, %v186
    %v220 = vunpack.c.l.b16 %v140
    %v221 = vunpack.c.l.b16 %v141
    %v222 = vunpack.c.l.b16 %v142
    %v223 = vunpack.c.l.b16 %v143
    %v224 = vunpack.c.l.b16 %v144
    %v225 = vunpack.c.l.b16 %v145
    %v226 = vunpack.c.l.b16 %v146
    %v227 = vunpack.c.l.b16 %v147
    %v228 = vunpack.c.l.b16 %v148
    %v229 = vunpack.c.l.b16 %v149
    %v230 = vunpack.c.l.b16 %v150
    %v231 = vunpack.c.l.b16 %v151
    %v232 = vunpack.c.l.b16 %v152
    %v233 = vunpack.c.l.b16 %v153
    %v234 = vunpack.c.l.b16 %v154
    %v235 = vunpack.c.l.b16 %v155
    %v236 = vpack.c.b16 %v221, %v220
    %v237 = vpack.c.b16 %v223, %v222
    %v238 = vpack.c.b16 %v225, %v224
    %v239 = vpack.c.b16 %v227, %v226
    %v240 = vpack.c.b16 %v229, %v228
    %v241 = vpack.c.b16 %v231, %v230
    %v242 = vpack.c.b16 %v233, %v232
    %v243 = vpack.c.b16 %v235, %v234
    %252 = vmatprep.subr.bf16.mxu0 0
    %253 = vmatpush1.bf16.msra.mxu0 %v236
    %254 = vmatprep.subr.bf16.mxu0 0
    %255 = vmatpush1.bf16.msra.mxu0 %v237
    %256 = vmatprep.subr.bf16.mxu0 0
    %257 = vmatpush1.bf16.msra.mxu0 %v238
    %258 = vmatprep.subr.bf16.mxu0 0
    %259 = vmatpush1.bf16.msra.mxu0 %v239
    %260 = vmatprep.subr.bf16.mxu0 0
    %261 = vmatpush1.bf16.msra.mxu0 %v240
    %262 = vmatprep.subr.bf16.mxu0 0
    %263 = vmatpush1.bf16.msra.mxu0 %v241
    %264 = vmatprep.subr.bf16.mxu0 0
    %265 = vmatpush1.bf16.msra.mxu0 %v242
    %266 = vmatprep.subr.bf16.mxu0 0
    %267 = vmatpush1.bf16.msra.mxu0 %v243
    %268 = vmatprep.subr.bf16.mxu0 0
    %269 = vmatpush1.bf16.msra.mxu0 0
    %270 = vmatprep.subr.bf16.mxu0 0
    %271 = vmatpush1.bf16.msra.mxu0 0
    %272 = vmatprep.subr.bf16.mxu0 0
    %273 = vmatpush1.bf16.msra.mxu0 0
    %274 = vmatprep.subr.bf16.mxu0 0
    %275 = vmatpush1.bf16.msra.mxu0 0
    %276 = vmatprep.subr.bf16.mxu0 0
    %277 = vmatpush1.bf16.msra.mxu0 0
    %278 = vmatprep.subr.bf16.mxu0 0
    %279 = vmatpush1.bf16.msra.mxu0 0
    %280 = vmatprep.subr.bf16.mxu0 0
    %281 = vmatpush1.bf16.msra.mxu0 0
    %282 = vmatprep.subr.bf16.mxu0 0
    %283 = vmatpush1.bf16.msra.mxu0 0
    %284 = vmatprep.mubr.bf16.mxu0 0
    %285 = vmatmul.mubr.bf16.gmra.mrb[0].mxu0 %v188
    %v286 = vpop.f32.mrb[0].mxu0
    %v287 = vadd.f32 0.0, %v286
    %v288 = vpop.f32.mrb[0].mxu0
    %v289 = vpop.f32.mrb[0].mxu0
    %v290 = vadd.f32 0.0, %v289
    %v291 = vpop.f32.mrb[0].mxu0
    %292 = vmatprep.mubr.bf16.mxu0 0
    %293 = vmatmul.mubr.bf16.gmra.mrb[0].mxu0 %v189
    %v294 = vpop.f32.mrb[0].mxu0
    %v295 = vadd.f32 0.0, %v294
    %v296 = vpop.f32.mrb[0].mxu0
    %v297 = vpop.f32.mrb[0].mxu0
    %v298 = vadd.f32 0.0, %v297
    %v299 = vpop.f32.mrb[0].mxu0
    %300 = vmatprep.mubr.bf16.mxu0 0
    %301 = vmatmul.mubr.bf16.gmra.mrb[0].mxu0 %v190
    %v302 = vpop.f32.mrb[0].mxu0
    %v303 = vadd.f32 0.0, %v302
    %v304 = vpop.f32.mrb[0].mxu0
    %v305 = vpop.f32.mrb[0].mxu0
    %v306 = vadd.f32 0.0, %v305
    %v307 = vpop.f32.mrb[0].mxu0
    %308 = vmatprep.mubr.bf16.mxu0 0
    %309 = vmatmul.mubr.bf16.gmra.mrb[0].mxu0 %v191
    %v310 = vpop.f32.mrb[0].mxu0
    %v311 = vadd.f32 0.0, %v310
    %v312 = vpop.f32.mrb[0].mxu0
    %v313 = vpop.f32.mrb[0].mxu0
    %v314 = vadd.f32 0.0, %v313
    %v315 = vpop.f32.mrb[0].mxu0
    %316 = vmatprep.mubr.bf16.mxu0 0
    %317 = vmatmul.mubr.bf16.gmra.mrb[0].mxu0 %v192
    %v318 = vpop.f32.mrb[0].mxu0
    %v319 = vadd.f32 0.0, %v318
    %v320 = vpop.f32.mrb[0].mxu0
    %v321 = vpop.f32.mrb[0].mxu0
    %v322 = vadd.f32 0.0, %v321
    %v323 = vpop.f32.mrb[0].mxu0
    %324 = vmatprep.mubr.bf16.mxu0 0
    %325 = vmatmul.mubr.bf16.gmra.mrb[0].mxu0 %v193
    %v326 = vpop.f32.mrb[0].mxu0
    %v327 = vadd.f32 0.0, %v326
    %v328 = vpop.f32.mrb[0].mxu0
    %v329 = vpop.f32.mrb[0].mxu0
    %v330 = vadd.f32 0.0, %v329
    %v331 = vpop.f32.mrb[0].mxu0
    %332 = vmatprep.mubr.bf16.mxu0 0
    %333 = vmatmul.mubr.bf16.gmra.mrb[0].mxu0 %v194
    %v334 = vpop.f32.mrb[0].mxu0
    %v335 = vadd.f32 0.0, %v334
    %v336 = vpop.f32.mrb[0].mxu0
    %v337 = vpop.f32.mrb[0].mxu0
    %v338 = vadd.f32 0.0, %v337
    %v339 = vpop.f32.mrb[0].mxu0
    %340 = vmatprep.mubr.bf16.mxu0 0
    %341 = vmatmul.mubr.bf16.gmra.mrb[0].mxu0 %v195
    %v342 = vpop.f32.mrb[0].mxu0
    %v343 = vadd.f32 0.0, %v342
    %v344 = vpop.f32.mrb[0].mxu0
    %v345 = vpop.f32.mrb[0].mxu0
    %v346 = vadd.f32 0.0, %v345
    %v347 = vpop.f32.mrb[0].mxu0
    %348 = vdwg.mxu0
    %v349 = vadd.f32 %v108, %v287
    %v350 = vadd.f32 %v109, %v290
    %v351 = vadd.f32 %v110, %v295
    %v352 = vadd.f32 %v111, %v298
    %v353 = vadd.f32 %v112, %v303
    %v354 = vadd.f32 %v113, %v306
    %v355 = vadd.f32 %v114, %v311
    %v356 = vadd.f32 %v115, %v314
    %v357 = vadd.f32 %v116, %v319
    %v358 = vadd.f32 %v117, %v322
    %v359 = vadd.f32 %v118, %v327
    %v360 = vadd.f32 %v119, %v330
    %v361 = vadd.f32 %v120, %v335
    %v362 = vadd.f32 %v121, %v338
    %v363 = vadd.f32 %v122, %v343
    %v364 = vadd.f32 %v123, %v346
    %365 = vst [vmem:[#allocation2] sm:$0xff] %v349
    %366 = vst [vmem:[#allocation2 + $0x8] sm:$0xff] %v350
    %367 = vst [vmem:[#allocation2 + $0x10] sm:$0xff] %v351
    %368 = vst [vmem:[#allocation2 + $0x18] sm:$0xff] %v352
    %369 = vst [vmem:[#allocation2 + $0x20] sm:$0xff] %v353
    %370 = vst [vmem:[#allocation2 + $0x28] sm:$0xff] %v354
    %371 = vst [vmem:[#allocation2 + $0x30] sm:$0xff] %v355
    %372 = vst [vmem:[#allocation2 + $0x38] sm:$0xff] %v356
    %373 = vst [vmem:[#allocation2 + $0x40] sm:$0xff] %v357
    %374 = vst [vmem:[#allocation2 + $0x48] sm:$0xff] %v358
    %375 = vst [vmem:[#allocation2 + $0x50] sm:$0xff] %v359
    %376 = vst [vmem:[#allocation2 + $0x58] sm:$0xff] %v360
    %377 = vst [vmem:[#allocation2 + $0x60] sm:$0xff] %v361
    %378 = vst [vmem:[#allocation2 + $0x68] sm:$0xff] %v362
    %379 = vst [vmem:[#allocation2 + $0x70] sm:$0xff] %v363
    %380 = vst [vmem:[#allocation2 + $0x78] sm:$0xff] %v364
    // Predicated region
    $region46: #{net_forward.3} parent=1 // pred_check
      %p381 = pneg %p88
    $region47: #{net_forward.3} parent=1 // pred_check_branch
      %383 = sbr.rel (%p381) target = $region49
    $region48: #{net_forward.3} parent=1 // pred_region
      %v384 = vld [vmem:[#allocation2] sm:$0xff]
      %v385 = vld [vmem:[#allocation2 + $0x8] sm:$0xff]
      %v386 = vld [vmem:[#allocation2 + $0x10] sm:$0xff]
      %v387 = vld [vmem:[#allocation2 + $0x18] sm:$0xff]
      %v388 = vld [vmem:[#allocation2 + $0x20] sm:$0xff]
      %v389 = vld [vmem:[#allocation2 + $0x28] sm:$0xff]
      %v390 = vld [vmem:[#allocation2 + $0x30] sm:$0xff]
      %v391 = vld [vmem:[#allocation2 + $0x38] sm:$0xff]
      %v392 = vld [vmem:[#allocation2 + $0x40] sm:$0xff]
      %v393 = vld [vmem:[#allocation2 + $0x48] sm:$0xff]
      %v394 = vld [vmem:[#allocation2 + $0x50] sm:$0xff]
      %v395 = vld [vmem:[#allocation2 + $0x58] sm:$0xff]
      %v396 = vld [vmem:[#allocation2 + $0x60] sm:$0xff]
      %v397 = vld [vmem:[#allocation2 + $0x68] sm:$0xff]
      %v398 = vld [vmem:[#allocation2 + $0x70] sm:$0xff]
      %v399 = vld [vmem:[#allocation2 + $0x78] sm:$0xff]
      %v400 = vpack.c.bf16 %v385, %v384
      %v401 = vpack.c.bf16 %v387, %v386
      %v402 = vpack.c.bf16 %v389, %v388
      %v403 = vpack.c.bf16 %v391, %v390
      %v404 = vpack.c.bf16 %v393, %v392
      %v405 = vpack.c.bf16 %v395, %v394
      %v406 = vpack.c.bf16 %v397, %v396
      %v407 = vpack.c.bf16 %v399, %v398
      %v408 = vld [vmem:[#allocation8] sm:$0xf]
      %v409 = vld [vmem:[#allocation8 + $0x4] sm:$0xf]
      %v410 = vld [vmem:[#allocation8 + $0x8] sm:$0xf]
      %v411 = vld [vmem:[#allocation8 + $0xc] sm:$0xf]
      %v412 = vld [vmem:[#allocation8 + $0x10] sm:$0xf]
      %v413 = vld [vmem:[#allocation8 + $0x14] sm:$0xf]
      %v414 = vld [vmem:[#allocation8 + $0x18] sm:$0xf]
      %v415 = vld [vmem:[#allocation8 + $0x1c] sm:$0xf]
      %v416 = vld [vmem:[#allocation8 + $0x20] sm:$0xf]
      %v417 = vld [vmem:[#allocation8 + $0x24] sm:$0xf]
      %v418 = vld [vmem:[#allocation8 + $0x28] sm:$0xf]
      %v419 = vld [vmem:[#allocation8 + $0x2c] sm:$0xf]
      %v420 = vld [vmem:[#allocation8 + $0x30] sm:$0xf]
      %v421 = vld [vmem:[#allocation8 + $0x34] sm:$0xf]
      %v422 = vld [vmem:[#allocation8 + $0x38] sm:$0xf]
      %v423 = vld [vmem:[#allocation8 + $0x3c] sm:$0xf]
      %v440 = vunpack.c.l.b16 %v408
      %v441 = vunpack.c.l.b16 %v409
      %v442 = vunpack.c.l.b16 %v410
      %v443 = vunpack.c.l.b16 %v411
      %v444 = vunpack.c.l.b16 %v412
      %v445 = vunpack.c.l.b16 %v413
      %v446 = vunpack.c.l.b16 %v414
      %v447 = vunpack.c.l.b16 %v415
      %v448 = vunpack.c.l.b16 %v416
      %v449 = vunpack.c.l.b16 %v417
      %v450 = vunpack.c.l.b16 %v418
      %v451 = vunpack.c.l.b16 %v419
      %v452 = vunpack.c.l.b16 %v420
      %v453 = vunpack.c.l.b16 %v421
      %v454 = vunpack.c.l.b16 %v422
      %v455 = vunpack.c.l.b16 %v423
      %v456 = vpack.c.b16 %v441, %v440
      %v457 = vpack.c.b16 %v443, %v442
      %v458 = vpack.c.b16 %v445, %v444
      %v459 = vpack.c.b16 %v447, %v446
      %v460 = vpack.c.b16 %v449, %v448
      %v461 = vpack.c.b16 %v451, %v450
      %v462 = vpack.c.b16 %v453, %v452
      %v463 = vpack.c.b16 %v455, %v454
      %v472 = vld [vmem:[#allocation9] sm:$0xf]
      %v473 = vld [vmem:[#allocation9 + $0x4] sm:$0xf]
      %v474 = vld [vmem:[#allocation9 + $0x8] sm:$0xf]
      %v475 = vld [vmem:[#allocation9 + $0xc] sm:$0xf]
      %v476 = vld [vmem:[#allocation9 + $0x10] sm:$0xf]
      %v477 = vld [vmem:[#allocation9 + $0x14] sm:$0xf]
      %v478 = vld [vmem:[#allocation9 + $0x18] sm:$0xf]
      %v479 = vld [vmem:[#allocation9 + $0x1c] sm:$0xf]
      %v480 = vld [vmem:[#allocation9 + $0x20] sm:$0xf]
      %v481 = vld [vmem:[#allocation9 + $0x24] sm:$0xf]
      %v482 = vld [vmem:[#allocation9 + $0x28] sm:$0xf]
      %v483 = vld [vmem:[#allocation9 + $0x2c] sm:$0xf]
      %v484 = vld [vmem:[#allocation9 + $0x30] sm:$0xf]
      %v485 = vld [vmem:[#allocation9 + $0x34] sm:$0xf]
      %v486 = vld [vmem:[#allocation9 + $0x38] sm:$0xf]
      %v487 = vld [vmem:[#allocation9 + $0x3c] sm:$0xf]
      %v488 = vld [vmem:[#allocation9 + $0x40] sm:$0xf]
      %v489 = vld [vmem:[#allocation9 + $0x44] sm:$0xf]
      %v490 = vld [vmem:[#allocation9 + $0x48] sm:$0xf]
      %v491 = vld [vmem:[#allocation9 + $0x4c] sm:$0xf]
      %v492 = vld [vmem:[#allocation9 + $0x50] sm:$0xf]
      %v493 = vld [vmem:[#allocation9 + $0x54] sm:$0xf]
      %v494 = vld [vmem:[#allocation9 + $0x58] sm:$0xf]
      %v495 = vld [vmem:[#allocation9 + $0x5c] sm:$0xf]
      %v496 = vld [vmem:[#allocation9 + $0x60] sm:$0xf]
      %v497 = vld [vmem:[#allocation9 + $0x64] sm:$0xf]
      %v498 = vld [vmem:[#allocation9 + $0x68] sm:$0xf]
      %v499 = vld [vmem:[#allocation9 + $0x6c] sm:$0xf]
      %v500 = vld [vmem:[#allocation9 + $0x70] sm:$0xf]
      %v501 = vld [vmem:[#allocation9 + $0x74] sm:$0xf]
      %v502 = vld [vmem:[#allocation9 + $0x78] sm:$0xf]
      %v503 = vld [vmem:[#allocation9 + $0x7c] sm:$0xf]
      %v504 = vld [vmem:[#allocation11] sm:$0x1]
      %v506 = vlaneseq
      %v507 = vshrl.u32 %v506, 7
      %v508 = vsub.s32 0, %v507
      %v509 = vrot.slane %v504, %v508
      %v543 = vunpack.c.l.b16 %v472
      %v544 = vunpack.c.l.b16 %v473
      %v545 = vunpack.c.l.b16 %v474
      %v546 = vunpack.c.l.b16 %v475
      %v547 = vunpack.c.l.b16 %v476
      %v548 = vunpack.c.l.b16 %v477
      %v549 = vunpack.c.l.b16 %v478
      %v550 = vunpack.c.l.b16 %v479
      %v551 = vunpack.c.l.b16 %v480
      %v552 = vunpack.c.l.b16 %v481
      %v553 = vunpack.c.l.b16 %v482
      %v554 = vunpack.c.l.b16 %v483
      %v555 = vunpack.c.l.b16 %v484
      %v556 = vunpack.c.l.b16 %v485
      %v557 = vunpack.c.l.b16 %v486
      %v558 = vunpack.c.l.b16 %v487
      %v559 = vunpack.c.l.b16 %v488
      %v560 = vunpack.c.l.b16 %v489
      %v561 = vunpack.c.l.b16 %v490
      %v562 = vunpack.c.l.b16 %v491
      %v563 = vunpack.c.l.b16 %v492
      %v564 = vunpack.c.l.b16 %v493
      %v565 = vunpack.c.l.b16 %v494
      %v566 = vunpack.c.l.b16 %v495
      %v567 = vunpack.c.l.b16 %v496
      %v568 = vunpack.c.l.b16 %v497
      %v569 = vunpack.c.l.b16 %v498
      %v570 = vunpack.c.l.b16 %v499
      %v571 = vunpack.c.l.b16 %v500
      %v572 = vunpack.c.l.b16 %v501
      %v573 = vunpack.c.l.b16 %v502
      %v574 = vunpack.c.l.b16 %v503
      %v575 = vpack.c.b16 %v544, %v543
      %v576 = vpack.c.b16 %v546, %v545
      %v577 = vpack.c.b16 %v548, %v547
      %v578 = vpack.c.b16 %v550, %v549
      %v579 = vpack.c.b16 %v552, %v551
      %v580 = vpack.c.b16 %v554, %v553
      %v581 = vpack.c.b16 %v556, %v555
      %v582 = vpack.c.b16 %v558, %v557
      %v583 = vpack.c.b16 %v560, %v559
      %v584 = vpack.c.b16 %v562, %v561
      %v585 = vpack.c.b16 %v564, %v563
      %v586 = vpack.c.b16 %v566, %v565
      %v587 = vpack.c.b16 %v568, %v567
      %v588 = vpack.c.b16 %v570, %v569
      %v589 = vpack.c.b16 %v572, %v571
      %v590 = vpack.c.b16 %v574, %v573
      %607 = vmatprep.subr.bf16.mxu0 0
      %608 = vmatpush1.bf16.msra.mxu0 %v575
      %609 = vmatprep.subr.bf16.mxu0 0
      %610 = vmatpush1.bf16.msra.mxu0 %v576
      %611 = vmatprep.subr.bf16.mxu0 0
      %612 = vmatpush1.bf16.msra.mxu0 %v577
      %613 = vmatprep.subr.bf16.mxu0 0
      %614 = vmatpush1.bf16.msra.mxu0 %v578
      %615 = vmatprep.subr.bf16.mxu0 0
      %616 = vmatpush1.bf16.msra.mxu0 %v579
      %617 = vmatprep.subr.bf16.mxu0 0
      %618 = vmatpush1.bf16.msra.mxu0 %v580
      %619 = vmatprep.subr.bf16.mxu0 0
      %620 = vmatpush1.bf16.msra.mxu0 %v581
      %621 = vmatprep.subr.bf16.mxu0 0
      %622 = vmatpush1.bf16.msra.mxu0 %v582
      %623 = vmatprep.subr.bf16.mxu0 0
      %624 = vmatpush1.bf16.msra.mxu0 %v583
      %625 = vmatprep.subr.bf16.mxu0 0
      %626 = vmatpush1.bf16.msra.mxu0 %v584
      %627 = vmatprep.subr.bf16.mxu0 0
      %628 = vmatpush1.bf16.msra.mxu0 %v585
      %629 = vmatprep.subr.bf16.mxu0 0
      %630 = vmatpush1.bf16.msra.mxu0 %v586
      %631 = vmatprep.subr.bf16.mxu0 0
      %632 = vmatpush1.bf16.msra.mxu0 %v587
      %633 = vmatprep.subr.bf16.mxu0 0
      %634 = vmatpush1.bf16.msra.mxu0 %v588
      %635 = vmatprep.subr.bf16.mxu0 0
      %636 = vmatpush1.bf16.msra.mxu0 %v589
      %637 = vmatprep.subr.bf16.mxu0 0
      %638 = vmatpush1.bf16.msra.mxu0 %v590
      %639 = vmatprep.mubr.bf16.mxu0 %v456
      %640 = vmatmul.mubr.bf16.gmra.mrb[0].mxu0 %v400
      %v641 = vpop.f32.mrb[0].mxu0
      %v642 = vadd.f32 %v509, %v641
      %v643 = vpop.f32.mrb[0].mxu0
      %v644 = vpop.f32.mrb[0].mxu0
      %v645 = vadd.f32 %v509, %v644
      %v646 = vpop.f32.mrb[0].mxu0
      %647 = vmatprep.mubr.bf16.mxu0 %v457
      %648 = vmatmul.mubr.bf16.gmra.mrb[0].mxu0 %v401
      %v649 = vpop.f32.mrb[0].mxu0
      %v650 = vadd.f32 %v509, %v649
      %v651 = vpop.f32.mrb[0].mxu0
      %v652 = vpop.f32.mrb[0].mxu0
      %v653 = vadd.f32 %v509, %v652
      %v654 = vpop.f32.mrb[0].mxu0
      %655 = vmatprep.mubr.bf16.mxu0 %v458
      %656 = vmatmul.mubr.bf16.gmra.mrb[0].mxu0 %v402
      %v657 = vpop.f32.mrb[0].mxu0
      %v658 = vadd.f32 %v509, %v657
      %v659 = vpop.f32.mrb[0].mxu0
      %v660 = vpop.f32.mrb[0].mxu0
      %v661 = vadd.f32 %v509, %v660
      %v662 = vpop.f32.mrb[0].mxu0
      %663 = vmatprep.mubr.bf16.mxu0 %v459
      %664 = vmatmul.mubr.bf16.gmra.mrb[0].mxu0 %v403
      %v665 = vpop.f32.mrb[0].mxu0
      %v666 = vadd.f32 %v509, %v665
      %v667 = vpop.f32.mrb[0].mxu0
      %v668 = vpop.f32.mrb[0].mxu0
      %v669 = vadd.f32 %v509, %v668
      %v670 = vpop.f32.mrb[0].mxu0
      %671 = vmatprep.mubr.bf16.mxu0 %v460
      %672 = vmatmul.mubr.bf16.gmra.mrb[0].mxu0 %v404
      %v673 = vpop.f32.mrb[0].mxu0
      %v674 = vadd.f32 %v509, %v673
      %v675 = vpop.f32.mrb[0].mxu0
      %v676 = vpop.f32.mrb[0].mxu0
      %v677 = vadd.f32 %v509, %v676
      %v678 = vpop.f32.mrb[0].mxu0
      %679 = vmatprep.mubr.bf16.mxu0 %v461
      %680 = vmatmul.mubr.bf16.gmra.mrb[0].mxu0 %v405
      %v681 = vpop.f32.mrb[0].mxu0
      %v682 = vadd.f32 %v509, %v681
      %v683 = vpop.f32.mrb[0].mxu0
      %v684 = vpop.f32.mrb[0].mxu0
      %v685 = vadd.f32 %v509, %v684
      %v686 = vpop.f32.mrb[0].mxu0
      %687 = vmatprep.mubr.bf16.mxu0 %v462
      %688 = vmatmul.mubr.bf16.gmra.mrb[0].mxu0 %v406
      %v689 = vpop.f32.mrb[0].mxu0
      %v690 = vadd.f32 %v509, %v689
      %v691 = vpop.f32.mrb[0].mxu0
      %v692 = vpop.f32.mrb[0].mxu0
      %v693 = vadd.f32 %v509, %v692
      %v694 = vpop.f32.mrb[0].mxu0
      %695 = vmatprep.mubr.bf16.mxu0 %v463
      %696 = vmatmul.mubr.bf16.gmra.mrb[0].mxu0 %v407
      %v697 = vpop.f32.mrb[0].mxu0
      %v698 = vadd.f32 %v509, %v697
      %v699 = vpop.f32.mrb[0].mxu0
      %v700 = vpop.f32.mrb[0].mxu0
      %v701 = vadd.f32 %v509, %v700
      %v702 = vpop.f32.mrb[0].mxu0
      %703 = vdwg.mxu0
      %v704 = vtanh.pop %v642
      %v705 = vtanh.pop %v645
      %v706 = vtanh.pop %v650
      %v707 = vtanh.pop %v653
      %v708 = vtanh.pop %v658
      %v709 = vtanh.pop %v661
      %v710 = vtanh.pop %v666
      %v711 = vtanh.pop %v669
      %v712 = vtanh.pop %v674
      %v713 = vtanh.pop %v677
      %v714 = vtanh.pop %v682
      %v715 = vtanh.pop %v685
      %v716 = vtanh.pop %v690
      %v717 = vtanh.pop %v693
      %v718 = vtanh.pop %v698
      %v719 = vtanh.pop %v701
      %v720 = vpack.c.bf16 %v705, %v704
      %v721 = vpack.c.bf16 %v707, %v706
      %v722 = vpack.c.bf16 %v709, %v708
      %v723 = vpack.c.bf16 %v711, %v710
      %v724 = vpack.c.bf16 %v713, %v712
      %v725 = vpack.c.bf16 %v715, %v714
      %v726 = vpack.c.bf16 %v717, %v716
      %v727 = vpack.c.bf16 %v719, %v718
      %v736 = vunpack.c.l.b16 %v720
      %v737 = vunpack.c.h.b16 %v720
      %v738 = vunpack.c.l.b16 %v721
      %v739 = vunpack.c.h.b16 %v721
      %v740 = vunpack.c.l.b16 %v722
      %v741 = vunpack.c.h.b16 %v722
      %v742 = vunpack.c.l.b16 %v723
      %v743 = vunpack.c.h.b16 %v723
      %v744 = vunpack.c.l.b16 %v724
      %v745 = vunpack.c.h.b16 %v724
      %v746 = vunpack.c.l.b16 %v725
      %v747 = vunpack.c.h.b16 %v725
      %v748 = vunpack.c.l.b16 %v726
      %v749 = vunpack.c.h.b16 %v726
      %v750 = vunpack.c.l.b16 %v727
      %v751 = vunpack.c.h.b16 %v727
      %v752 = vpack.c.b16 %v736, %v736
      %v753 = vpack.c.b16 %v737, %v737
      %v754 = vpack.c.b16 %v738, %v738
      %v755 = vpack.c.b16 %v739, %v739
      %v756 = vpack.c.b16 %v740, %v740
      %v757 = vpack.c.b16 %v741, %v741
      %v758 = vpack.c.b16 %v742, %v742
      %v759 = vpack.c.b16 %v743, %v743
      %v760 = vpack.c.b16 %v744, %v744
      %v761 = vpack.c.b16 %v745, %v745
      %v762 = vpack.c.b16 %v746, %v746
      %v763 = vpack.c.b16 %v747, %v747
      %v764 = vpack.c.b16 %v748, %v748
      %v765 = vpack.c.b16 %v749, %v749
      %v766 = vpack.c.b16 %v750, %v750
      %v767 = vpack.c.b16 %v751, %v751
      %784 = vst [vmem:[#allocation12] sm:$0xf] %v752
      %785 = vst [vmem:[#allocation12 + $0x4] sm:$0xf] %v753
      %786 = vst [vmem:[#allocation12 + $0x8] sm:$0xf] %v754
      %787 = vst [vmem:[#allocation12 + $0xc] sm:$0xf] %v755
      %788 = vst [vmem:[#allocation12 + $0x10] sm:$0xf] %v756
      %789 = vst [vmem:[#allocation12 + $0x14] sm:$0xf] %v757
      %790 = vst [vmem:[#allocation12 + $0x18] sm:$0xf] %v758
      %791 = vst [vmem:[#allocation12 + $0x1c] sm:$0xf] %v759
      %792 = vst [vmem:[#allocation12 + $0x20] sm:$0xf] %v760
      %793 = vst [vmem:[#allocation12 + $0x24] sm:$0xf] %v761
      %794 = vst [vmem:[#allocation12 + $0x28] sm:$0xf] %v762
      %795 = vst [vmem:[#allocation12 + $0x2c] sm:$0xf] %v763
      %796 = vst [vmem:[#allocation12 + $0x30] sm:$0xf] %v764
      %797 = vst [vmem:[#allocation12 + $0x34] sm:$0xf] %v765
      %798 = vst [vmem:[#allocation12 + $0x38] sm:$0xf] %v766
      %799 = vst [vmem:[#allocation12 + $0x3c] sm:$0xf] %v767
    $region49: #{net_forward.3} parent=1 // pred_fallthru
      _
    // Predicated region
    $region50: #{net_forward.3} parent=1 // pred_check
      _
    $region51: #{net_forward.3} parent=1 // pred_check_branch
      %801 = sbr.rel (0) target = $region53
    $region52: #{net_forward.3} parent=1 // pred_region
      %s803 = ssub.s32 1024, 1024
      %804 = vsyncadd [#allocation5], %s803
      %s805 = sshll.u32 [#allocation12], 4
      %s806 = int_to_ptr.vmem [resolvable:$true] %s805
      %811 = dma.vmem_to_hbm [thread:$0]  %s806, 1024, %s5, [#allocation5], 64, 64, 4
    $region53: #{net_forward.3} parent=1 // pred_fallthru
      _
    // Predicated region
    $region54: #{net_forward.3} parent=1 // pred_check
      _
    $region55: #{net_forward.3} parent=1 // pred_check_branch
      %813 = sbr.rel (0) target = $region57
    $region56: #{net_forward.3} parent=1 // pred_region
      %814 = dma.done [#allocation5], 1024
    $region57: #{net_forward.3} parent=1 // pred_fallthru
      _
    %815 = vsyncpa [#allocation4], 1
    %816 = vsyncpa [#allocation7], 1
    %817 = vsyncpa [#allocation10], 1
    %818 = vsyncpa [#allocation5], 1

</llo_original>
